<compile_context>
chip_gen: v7x
topology: tpu7x:2x2x1
jax: 0.10.0
libtpu: 0.0.40
codegen_flags: <defaults>
</compile_context>

<pallas_src>
import functools

import jax
import jax.numpy as jnp
from jax.experimental import pallas as pl
from jax.experimental.pallas import tpu as pltpu


def _lstm_encoder_kernel(data_ref, wih0_ref, wihr_ref, whh_ref, b_ref, out_ref,
                         *, num_layers, hidden_size):
    B, S = data_ref.shape
    H = hidden_size
    L = num_layers

    # Lane mask selecting the 'g' (tanh) gate lanes [2H, 3H) inside the packed
    # (B, 4H) gate vector (PyTorch gate order [i, f, g, o]).  Built once and
    # reused every timestep/layer (JAX does not CSE broadcast_in_dim).
    lane = jax.lax.broadcasted_iota(jnp.int32, (B, 4 * H), 1)
    g_lane = jnp.logical_and(lane >= 2 * H, lane < 3 * H)

    def run_layer(gates_in, whh, collect_outputs):
        """gates_in: list of S arrays (B, 4H) = input projection + bias (f32).
        whh: (H, 4H) recurrent weights (f32, or bf16 for the MXU)."""
        h = jnp.zeros((B, H), jnp.float32)
        c = jnp.zeros((B, H), jnp.float32)
        outs = []
        # Static unroll -- S and L are tiny here.
        # TODO(synk): switch to lax.fori_loop(..., unroll=k) if S*L grows.
        for t in range(S):
            # Only h @ W_hh sits on the serial chain.
            gates = gates_in[t] + jnp.dot(h.astype(whh.dtype), whh,
                                          preferred_element_type=jnp.float32)
            # Full-vreg activation pass + lane-mask select, then extract gates.
            act = jnp.where(g_lane, jnp.tanh(gates), jax.nn.sigmoid(gates))
            i = act[:, 0 * H:1 * H]
            f = act[:, 1 * H:2 * H]
            g = act[:, 2 * H:3 * H]
            o = act[:, 3 * H:4 * H]
            c = f * c + i * g
            h = o * jnp.tanh(c)
            if collect_outputs:
                outs.append(h)
        return h, outs

    # ---- layer 0: input feature size 1 (normalization folded into weights) ----
    dat = data_ref[...]                     # (B, S) raw, un-normalized
    w0 = wih0_ref[...]                      # (1, 4H) == W_ih0.T / std
    b0 = b_ref[0:1]                         # (1, 4H) folded bias
    gates_in0 = [dat[:, t:t + 1] * w0 + b0 for t in range(S)]  # off the recurrence
    h, outs = run_layer(gates_in0, whh_ref[0], collect_outputs=(L > 1))

    # ---- layers 1 .. L-1: input projection hoisted off the recurrence ----
    for l in range(1, L):
        x_cat = jnp.concatenate(outs, axis=0)              # (S*B, H), t-major
        wih = wihr_ref[l - 1]                               # (H, 4H)
        xp = jnp.dot(x_cat.astype(wih.dtype), wih,
                     preferred_element_type=jnp.float32) + b_ref[l:l + 1]
        gates_in = [xp[t * B:(t + 1) * B] for t in range(S)]
        h, outs = run_layer(gates_in, whh_ref[l], collect_outputs=(l < L - 1))

    out_ref[...] = h                                        # h_end[-1, :, :]


def init_lstm_params(key, hidden_size, num_layers):
    """PyTorch-style nn.LSTM params: per layer (W_ih (4H,in), W_hh (4H,H), b_ih, b_hh)."""
    H = hidden_size
    bound = 1.0 / (H ** 0.5)
    params = []
    for l in range(num_layers):
        in_sz = 1 if l == 0 else H
        key, k1, k2, k3, k4 = jax.random.split(key, 5)
        w_ih = jax.random.uniform(k1, (4 * H, in_sz), jnp.float32, -bound, bound)
        w_hh = jax.random.uniform(k2, (4 * H, H), jnp.float32, -bound, bound)
        b_ih = jax.random.uniform(k3, (4 * H,), jnp.float32, -bound, bound)
        b_hh = jax.random.uniform(k4, (4 * H,), jnp.float32, -bound, bound)
        params.append((w_ih, w_hh, b_ih, b_hh))
    return params


def encoder_forward(y, x, lstm_params, hidden_size, mean=0.0, std=1.0,
                    use_bf16_matmul=False, block_batch=128):
    """Pallas Encoder forward.  y: (B,1)  x: (B, condition_size)  -> (B, hidden_size)."""
    H = hidden_size
    L = len(lstm_params)
    data = jnp.concatenate([y, x], axis=1).astype(jnp.float32)    # (B, S)
    B, S = data.shape

    # bf16 weights only feed the MXU; all gate / state math stays f32 (v5e-safe).
    mm_dtype = jnp.bfloat16 if use_bf16_matmul else jnp.float32

    # Fold (x - mean) / std into the layer-0 input weights & bias (constant fold).
    w0_col = lstm_params[0][0].astype(jnp.float32)                # (4H, 1)
    wih0 = w0_col.T / std                                         # (1, 4H)
    b0 = (lstm_params[0][2] + lstm_params[0][3]).astype(jnp.float32) \
        - (mean / std) * w0_col[:, 0]                             # (4H,)
    b_rows = [b0] + [(p[2] + p[3]).astype(jnp.float32) for p in lstm_params[1:]]
    b = jnp.stack(b_rows)                                         # (L, 4H)

    whh = jnp.stack([p[1].T for p in lstm_params]).astype(mm_dtype)          # (L, H, 4H)
    if L > 1:
        wihr = jnp.stack([p[0].T for p in lstm_params[1:]]).astype(mm_dtype)  # (L-1, H, 4H)
    else:
        wihr = jnp.zeros((1, H, 4 * H), mm_dtype)                 # unused dummy

    # Tile the batch over a parallel grid axis (uses both v7x TensorCores and
    # keeps the per-block working set flat as B scales).  Keep whole tiles.
    tb = min(B, block_batch)
    if B % tb != 0:
        tb = B
    grid = (B // tb,)

    kernel = functools.partial(_lstm_encoder_kernel, num_layers=L, hidden_size=H)

    return pl.pallas_call(
        kernel,
        out_shape=jax.ShapeDtypeStruct((B, H), jnp.float32),
        grid=grid,
        in_specs=[
            pl.BlockSpec((tb, S), lambda i: (i, 0)),              # data (batch-tiled)
            pl.BlockSpec(wih0.shape, lambda i: (0, 0)),
            pl.BlockSpec(wihr.shape, lambda i: (0, 0, 0)),
            pl.BlockSpec(whh.shape, lambda i: (0, 0, 0)),
            pl.BlockSpec(b.shape, lambda i: (0, 0)),
        ],
        out_specs=pl.BlockSpec((tb, H), lambda i: (i, 0)),
        compiler_params=pltpu.CompilerParams(
            dimension_semantics=("parallel",)),
    )(data, wih0, wihr, whh, b)


def encoder_reference(y, x, lstm_params, hidden_size, mean=0.0, std=1.0):
    """Pure-JAX reference matching PyTorch nn.LSTM (eval-mode) semantics."""
    H = hidden_size
    data = (jnp.concatenate([y, x], axis=1) - mean) / std         # (B, S)
    seq = data.T[:, :, None]                                      # (S, B, 1)
    inp = seq
    B = data.shape[0]
    h = None
    for (w_ih, w_hh, b_ih, b_hh) in lstm_params:
        h = jnp.zeros((B, H), jnp.float32)
        c = jnp.zeros((B, H), jnp.float32)
        outs = []
        for t in range(inp.shape[0]):
            gates = inp[t] @ w_ih.T + h @ w_hh.T + b_ih + b_hh
            i = jax.nn.sigmoid(gates[:, 0 * H:1 * H])
            f = jax.nn.sigmoid(gates[:, 1 * H:2 * H])
            g = jnp.tanh(gates[:, 2 * H:3 * H])
            o = jax.nn.sigmoid(gates[:, 3 * H:4 * H])
            c = f * c + i * g
            h = o * jnp.tanh(c)
            outs.append(h)
        inp = jnp.stack(outs)
    return h


if __name__ == "__main__":
    # Small shapes consistent with the module.
    batch = 8
    condition_size = 7          # -> sequence length S = 8
    hidden_size = 32
    hidden_layer_depth = 2
    mean, std = 0.1, 1.5

    key = jax.random.PRNGKey(0)
    k_y, k_x, k_p = jax.random.split(key, 3)
    y = jax.random.normal(k_y, (batch, 1), jnp.float32)
    x = jax.random.normal(k_x, (batch, condition_size), jnp.float32)

    params = init_lstm_params(k_p, hidden_size, hidden_layer_depth)
    ref = encoder_reference(y, x, params, hidden_size, mean=mean, std=std)

    # Default f32 path: matches the PyTorch eval-mode forward tightly.
    out = encoder_forward(y, x, params, hidden_size, mean=mean, std=std)
    out = jax.block_until_ready(out)
    assert out.shape == (batch, hidden_size)
    assert jnp.allclose(out, ref, atol=1e-5, rtol=1e-5), (
        f"f32 max abs err = {jnp.max(jnp.abs(out - ref))}")

    # bf16-MXU path (recommended on v6e / v7x); gate math stays f32.
    out_bf16 = encoder_forward(y, x, params, hidden_size, mean=mean, std=std,
                               use_bf16_matmul=True)
    out_bf16 = jax.block_until_ready(out_bf16)
    assert bool(jnp.all(jnp.isfinite(out_bf16)))
    assert float(jnp.max(jnp.abs(out_bf16 - ref))) < 1e-1, (
        f"bf16 max abs err = {jnp.max(jnp.abs(out_bf16 - ref))}")

    print("KERNEL_OK")
</pallas_src>

<mosaic_0001>
module attributes {stable_mosaic.version = 11 : i64} {
  func.func @_lstm_encoder_kernel(%arg0: i32, %arg1: memref<8x8xf32, #tpu.memory_space<vmem>>, %arg2: memref<1x128xf32, #tpu.memory_space<vmem>>, %arg3: memref<1x32x128xf32, #tpu.memory_space<vmem>>, %arg4: memref<2x32x128xf32, #tpu.memory_space<vmem>>, %arg5: memref<2x128xf32, #tpu.memory_space<vmem>>, %arg6: memref<8x32xf32, #tpu.memory_space<vmem>>) attributes {dimension_semantics = [#tpu.dimension_semantics<parallel>], iteration_bounds = array<i64: 1>, scalar_prefetch = 0 : i64, scratch_operands = 0 : i64, tpu.core_type = #tpu.core_type<tc>, window_params = [{transform_indices = @transform_0, window_bounds = array<i64: 8, 8>}, {pipeline_mode = #tpu.pipeline_mode<synchronous>, transform_indices = @transform_1, window_bounds = array<i64: 1, 128>}, {pipeline_mode = #tpu.pipeline_mode<synchronous>, transform_indices = @transform_2, window_bounds = array<i64: 1, 32, 128>}, {pipeline_mode = #tpu.pipeline_mode<synchronous>, transform_indices = @transform_3, window_bounds = array<i64: 2, 32, 128>}, {pipeline_mode = #tpu.pipeline_mode<synchronous>, transform_indices = @transform_4, window_bounds = array<i64: 2, 128>}, {transform_indices = @transform_5, window_bounds = array<i64: 8, 32>}]} {
    %0 = tpu.iota {dimensions = array<i32: 1>} : vector<8x128xi32>
    %c64_i32 = arith.constant 64 : i32
    %1 = vector.broadcast %c64_i32 : i32 to vector<8x128xi32>
    %2 = arith.cmpi sge, %0, %1 : vector<8x128xi32>
    %c96_i32 = arith.constant 96 : i32
    %3 = vector.broadcast %c96_i32 : i32 to vector<8x128xi32>
    %4 = arith.cmpi slt, %0, %3 : vector<8x128xi32>
    %5 = arith.andi %2, %4 : vector<8x128xi1>
    %c0 = arith.constant 0 : index
    %c0_0 = arith.constant 0 : index
    %6 = vector.load %arg1[%c0, %c0_0] : memref<8x8xf32, #tpu.memory_space<vmem>>, vector<8x8xf32>
    %c0_1 = arith.constant 0 : index
    %c0_2 = arith.constant 0 : index
    %7 = vector.load %arg2[%c0_1, %c0_2] : memref<1x128xf32, #tpu.memory_space<vmem>>, vector<1x128xf32>
    %c0_3 = arith.constant 0 : index
    %c0_4 = arith.constant 0 : index
    %8 = vector.load %arg5[%c0_3, %c0_4] : memref<2x128xf32, #tpu.memory_space<vmem>>, vector<1x128xf32>
    %9 = vector.extract_strided_slice %6 {offsets = [0, 0], sizes = [8, 1], strides = [1, 1]} : vector<8x8xf32> to vector<8x1xf32>
    %10 = vector.broadcast %9 : vector<8x1xf32> to vector<8x128xf32>
    %11 = vector.broadcast %7 : vector<1x128xf32> to vector<8x128xf32>
    %12 = arith.mulf %10, %11 : vector<8x128xf32>
    %13 = vector.broadcast %8 : vector<1x128xf32> to vector<8x128xf32>
    %14 = arith.addf %12, %13 : vector<8x128xf32>
    %15 = vector.extract_strided_slice %6 {offsets = [0, 1], sizes = [8, 1], strides = [1, 1]} : vector<8x8xf32> to vector<8x1xf32>
    %16 = vector.broadcast %15 : vector<8x1xf32> to vector<8x128xf32>
    %17 = vector.broadcast %7 : vector<1x128xf32> to vector<8x128xf32>
    %18 = arith.mulf %16, %17 : vector<8x128xf32>
    %19 = vector.broadcast %8 : vector<1x128xf32> to vector<8x128xf32>
    %20 = arith.addf %18, %19 : vector<8x128xf32>
    %21 = vector.extract_strided_slice %6 {offsets = [0, 2], sizes = [8, 1], strides = [1, 1]} : vector<8x8xf32> to vector<8x1xf32>
    %22 = vector.broadcast %21 : vector<8x1xf32> to vector<8x128xf32>
    %23 = vector.broadcast %7 : vector<1x128xf32> to vector<8x128xf32>
    %24 = arith.mulf %22, %23 : vector<8x128xf32>
    %25 = vector.broadcast %8 : vector<1x128xf32> to vector<8x128xf32>
    %26 = arith.addf %24, %25 : vector<8x128xf32>
    %27 = vector.extract_strided_slice %6 {offsets = [0, 3], sizes = [8, 1], strides = [1, 1]} : vector<8x8xf32> to vector<8x1xf32>
    %28 = vector.broadcast %27 : vector<8x1xf32> to vector<8x128xf32>
    %29 = vector.broadcast %7 : vector<1x128xf32> to vector<8x128xf32>
    %30 = arith.mulf %28, %29 : vector<8x128xf32>
    %31 = vector.broadcast %8 : vector<1x128xf32> to vector<8x128xf32>
    %32 = arith.addf %30, %31 : vector<8x128xf32>
    %33 = vector.extract_strided_slice %6 {offsets = [0, 4], sizes = [8, 1], strides = [1, 1]} : vector<8x8xf32> to vector<8x1xf32>
    %34 = vector.broadcast %33 : vector<8x1xf32> to vector<8x128xf32>
    %35 = vector.broadcast %7 : vector<1x128xf32> to vector<8x128xf32>
    %36 = arith.mulf %34, %35 : vector<8x128xf32>
    %37 = vector.broadcast %8 : vector<1x128xf32> to vector<8x128xf32>
    %38 = arith.addf %36, %37 : vector<8x128xf32>
    %39 = vector.extract_strided_slice %6 {offsets = [0, 5], sizes = [8, 1], strides = [1, 1]} : vector<8x8xf32> to vector<8x1xf32>
    %40 = vector.broadcast %39 : vector<8x1xf32> to vector<8x128xf32>
    %41 = vector.broadcast %7 : vector<1x128xf32> to vector<8x128xf32>
    %42 = arith.mulf %40, %41 : vector<8x128xf32>
    %43 = vector.broadcast %8 : vector<1x128xf32> to vector<8x128xf32>
    %44 = arith.addf %42, %43 : vector<8x128xf32>
    %45 = vector.extract_strided_slice %6 {offsets = [0, 6], sizes = [8, 1], strides = [1, 1]} : vector<8x8xf32> to vector<8x1xf32>
    %46 = vector.broadcast %45 : vector<8x1xf32> to vector<8x128xf32>
    %47 = vector.broadcast %7 : vector<1x128xf32> to vector<8x128xf32>
    %48 = arith.mulf %46, %47 : vector<8x128xf32>
    %49 = vector.broadcast %8 : vector<1x128xf32> to vector<8x128xf32>
    %50 = arith.addf %48, %49 : vector<8x128xf32>
    %51 = vector.extract_strided_slice %6 {offsets = [0, 7], sizes = [8, 1], strides = [1, 1]} : vector<8x8xf32> to vector<8x1xf32>
    %52 = vector.broadcast %51 : vector<8x1xf32> to vector<8x128xf32>
    %53 = vector.broadcast %7 : vector<1x128xf32> to vector<8x128xf32>
    %54 = arith.mulf %52, %53 : vector<8x128xf32>
    %55 = vector.broadcast %8 : vector<1x128xf32> to vector<8x128xf32>
    %56 = arith.addf %54, %55 : vector<8x128xf32>
    %c0_5 = arith.constant 0 : index
    %c0_6 = arith.constant 0 : index
    %c0_7 = arith.constant 0 : index
    %57 = vector.load %arg4[%c0_5, %c0_6, %c0_7] : memref<2x32x128xf32, #tpu.memory_space<vmem>>, vector<1x32x128xf32>
    %58 = vector.shape_cast %57 : vector<1x32x128xf32> to vector<32x128xf32>
    %cst = arith.constant 0.000000e+00 : f32
    %59 = vector.broadcast %cst : f32 to vector<8x32xf32>
    %cst_8 = arith.constant 0.000000e+00 : f32
    %60 = vector.broadcast %cst_8 : f32 to vector<8x32xf32>
    %cst_9 = arith.constant dense<0.000000e+00> : vector<8x128xf32>
    %61 = tpu.matmul %59, %58, %cst_9 {dimension_numbers = #tpu.dot_dimension_numbers<[1], [0], [0], [1], [0, 0, 1, 1], [], []>} : vector<8x32xf32>, vector<32x128xf32>, vector<8x128xf32> -> vector<8x128xf32>
    %62 = arith.addf %14, %61 : vector<8x128xf32>
    %63 = math.tanh %62 : vector<8x128xf32>
    %64 = arith.negf %62 : vector<8x128xf32>
    %65 = math.exp %64 : vector<8x128xf32>
    %cst_10 = arith.constant 1.000000e+00 : f32
    %66 = vector.broadcast %cst_10 : f32 to vector<8x128xf32>
    %67 = arith.addf %66, %65 : vector<8x128xf32>
    %68 = arith.divf %66, %67 : vector<8x128xf32>
    %69 = arith.select %5, %63, %68 : vector<8x128xi1>, vector<8x128xf32>
    %70 = vector.extract_strided_slice %69 {offsets = [0, 0], sizes = [8, 32], strides = [1, 1]} : vector<8x128xf32> to vector<8x32xf32>
    %71 = vector.extract_strided_slice %69 {offsets = [0, 32], sizes = [8, 32], strides = [1, 1]} : vector<8x128xf32> to vector<8x32xf32>
    %72 = vector.extract_strided_slice %69 {offsets = [0, 64], sizes = [8, 32], strides = [1, 1]} : vector<8x128xf32> to vector<8x32xf32>
    %73 = vector.extract_strided_slice %69 {offsets = [0, 96], sizes = [8, 32], strides = [1, 1]} : vector<8x128xf32> to vector<8x32xf32>
    %74 = arith.mulf %71, %60 : vector<8x32xf32>
    %75 = arith.mulf %70, %72 : vector<8x32xf32>
    %76 = arith.addf %74, %75 : vector<8x32xf32>
    %77 = math.tanh %76 : vector<8x32xf32>
    %78 = arith.mulf %73, %77 : vector<8x32xf32>
    %cst_11 = arith.constant dense<0.000000e+00> : vector<8x128xf32>
    %79 = tpu.matmul %78, %58, %cst_11 {dimension_numbers = #tpu.dot_dimension_numbers<[1], [0], [0], [1], [0, 0, 1, 1], [], []>} : vector<8x32xf32>, vector<32x128xf32>, vector<8x128xf32> -> vector<8x128xf32>
    %80 = arith.addf %20, %79 : vector<8x128xf32>
    %81 = math.tanh %80 : vector<8x128xf32>
    %82 = arith.negf %80 : vector<8x128xf32>
    %83 = math.exp %82 : vector<8x128xf32>
    %cst_12 = arith.constant 1.000000e+00 : f32
    %84 = vector.broadcast %cst_12 : f32 to vector<8x128xf32>
    %85 = arith.addf %84, %83 : vector<8x128xf32>
    %86 = arith.divf %84, %85 : vector<8x128xf32>
    %87 = arith.select %5, %81, %86 : vector<8x128xi1>, vector<8x128xf32>
    %88 = vector.extract_strided_slice %87 {offsets = [0, 0], sizes = [8, 32], strides = [1, 1]} : vector<8x128xf32> to vector<8x32xf32>
    %89 = vector.extract_strided_slice %87 {offsets = [0, 32], sizes = [8, 32], strides = [1, 1]} : vector<8x128xf32> to vector<8x32xf32>
    %90 = vector.extract_strided_slice %87 {offsets = [0, 64], sizes = [8, 32], strides = [1, 1]} : vector<8x128xf32> to vector<8x32xf32>
    %91 = vector.extract_strided_slice %87 {offsets = [0, 96], sizes = [8, 32], strides = [1, 1]} : vector<8x128xf32> to vector<8x32xf32>
    %92 = arith.mulf %89, %76 : vector<8x32xf32>
    %93 = arith.mulf %88, %90 : vector<8x32xf32>
    %94 = arith.addf %92, %93 : vector<8x32xf32>
    %95 = math.tanh %94 : vector<8x32xf32>
    %96 = arith.mulf %91, %95 : vector<8x32xf32>
    %cst_13 = arith.constant dense<0.000000e+00> : vector<8x128xf32>
    %97 = tpu.matmul %96, %58, %cst_13 {dimension_numbers = #tpu.dot_dimension_numbers<[1], [0], [0], [1], [0, 0, 1, 1], [], []>} : vector<8x32xf32>, vector<32x128xf32>, vector<8x128xf32> -> vector<8x128xf32>
    %98 = arith.addf %26, %97 : vector<8x128xf32>
    %99 = math.tanh %98 : vector<8x128xf32>
    %100 = arith.negf %98 : vector<8x128xf32>
    %101 = math.exp %100 : vector<8x128xf32>
    %cst_14 = arith.constant 1.000000e+00 : f32
    %102 = vector.broadcast %cst_14 : f32 to vector<8x128xf32>
    %103 = arith.addf %102, %101 : vector<8x128xf32>
    %104 = arith.divf %102, %103 : vector<8x128xf32>
    %105 = arith.select %5, %99, %104 : vector<8x128xi1>, vector<8x128xf32>
    %106 = vector.extract_strided_slice %105 {offsets = [0, 0], sizes = [8, 32], strides = [1, 1]} : vector<8x128xf32> to vector<8x32xf32>
    %107 = vector.extract_strided_slice %105 {offsets = [0, 32], sizes = [8, 32], strides = [1, 1]} : vector<8x128xf32> to vector<8x32xf32>
    %108 = vector.extract_strided_slice %105 {offsets = [0, 64], sizes = [8, 32], strides = [1, 1]} : vector<8x128xf32> to vector<8x32xf32>
    %109 = vector.extract_strided_slice %105 {offsets = [0, 96], sizes = [8, 32], strides = [1, 1]} : vector<8x128xf32> to vector<8x32xf32>
    %110 = arith.mulf %107, %94 : vector<8x32xf32>
    %111 = arith.mulf %106, %108 : vector<8x32xf32>
    %112 = arith.addf %110, %111 : vector<8x32xf32>
    %113 = math.tanh %112 : vector<8x32xf32>
    %114 = arith.mulf %109, %113 : vector<8x32xf32>
    %cst_15 = arith.constant dense<0.000000e+00> : vector<8x128xf32>
    %115 = tpu.matmul %114, %58, %cst_15 {dimension_numbers = #tpu.dot_dimension_numbers<[1], [0], [0], [1], [0, 0, 1, 1], [], []>} : vector<8x32xf32>, vector<32x128xf32>, vector<8x128xf32> -> vector<8x128xf32>
    %116 = arith.addf %32, %115 : vector<8x128xf32>
    %117 = math.tanh %116 : vector<8x128xf32>
    %118 = arith.negf %116 : vector<8x128xf32>
    %119 = math.exp %118 : vector<8x128xf32>
    %cst_16 = arith.constant 1.000000e+00 : f32
    %120 = vector.broadcast %cst_16 : f32 to vector<8x128xf32>
    %121 = arith.addf %120, %119 : vector<8x128xf32>
    %122 = arith.divf %120, %121 : vector<8x128xf32>
    %123 = arith.select %5, %117, %122 : vector<8x128xi1>, vector<8x128xf32>
    %124 = vector.extract_strided_slice %123 {offsets = [0, 0], sizes = [8, 32], strides = [1, 1]} : vector<8x128xf32> to vector<8x32xf32>
    %125 = vector.extract_strided_slice %123 {offsets = [0, 32], sizes = [8, 32], strides = [1, 1]} : vector<8x128xf32> to vector<8x32xf32>
    %126 = vector.extract_strided_slice %123 {offsets = [0, 64], sizes = [8, 32], strides = [1, 1]} : vector<8x128xf32> to vector<8x32xf32>
    %127 = vector.extract_strided_slice %123 {offsets = [0, 96], sizes = [8, 32], strides = [1, 1]} : vector<8x128xf32> to vector<8x32xf32>
    %128 = arith.mulf %125, %112 : vector<8x32xf32>
    %129 = arith.mulf %124, %126 : vector<8x32xf32>
    %130 = arith.addf %128, %129 : vector<8x32xf32>
    %131 = math.tanh %130 : vector<8x32xf32>
    %132 = arith.mulf %127, %131 : vector<8x32xf32>
    %cst_17 = arith.constant dense<0.000000e+00> : vector<8x128xf32>
    %133 = tpu.matmul %132, %58, %cst_17 {dimension_numbers = #tpu.dot_dimension_numbers<[1], [0], [0], [1], [0, 0, 1, 1], [], []>} : vector<8x32xf32>, vector<32x128xf32>, vector<8x128xf32> -> vector<8x128xf32>
    %134 = arith.addf %38, %133 : vector<8x128xf32>
    %135 = math.tanh %134 : vector<8x128xf32>
    %136 = arith.negf %134 : vector<8x128xf32>
    %137 = math.exp %136 : vector<8x128xf32>
    %cst_18 = arith.constant 1.000000e+00 : f32
    %138 = vector.broadcast %cst_18 : f32 to vector<8x128xf32>
    %139 = arith.addf %138, %137 : vector<8x128xf32>
    %140 = arith.divf %138, %139 : vector<8x128xf32>
    %141 = arith.select %5, %135, %140 : vector<8x128xi1>, vector<8x128xf32>
    %142 = vector.extract_strided_slice %141 {offsets = [0, 0], sizes = [8, 32], strides = [1, 1]} : vector<8x128xf32> to vector<8x32xf32>
    %143 = vector.extract_strided_slice %141 {offsets = [0, 32], sizes = [8, 32], strides = [1, 1]} : vector<8x128xf32> to vector<8x32xf32>
    %144 = vector.extract_strided_slice %141 {offsets = [0, 64], sizes = [8, 32], strides = [1, 1]} : vector<8x128xf32> to vector<8x32xf32>
    %145 = vector.extract_strided_slice %141 {offsets = [0, 96], sizes = [8, 32], strides = [1, 1]} : vector<8x128xf32> to vector<8x32xf32>
    %146 = arith.mulf %143, %130 : vector<8x32xf32>
    %147 = arith.mulf %142, %144 : vector<8x32xf32>
    %148 = arith.addf %146, %147 : vector<8x32xf32>
    %149 = math.tanh %148 : vector<8x32xf32>
    %150 = arith.mulf %145, %149 : vector<8x32xf32>
    %cst_19 = arith.constant dense<0.000000e+00> : vector<8x128xf32>
    %151 = tpu.matmul %150, %58, %cst_19 {dimension_numbers = #tpu.dot_dimension_numbers<[1], [0], [0], [1], [0, 0, 1, 1], [], []>} : vector<8x32xf32>, vector<32x128xf32>, vector<8x128xf32> -> vector<8x128xf32>
    %152 = arith.addf %44, %151 : vector<8x128xf32>
    %153 = math.tanh %152 : vector<8x128xf32>
    %154 = arith.negf %152 : vector<8x128xf32>
    %155 = math.exp %154 : vector<8x128xf32>
    %cst_20 = arith.constant 1.000000e+00 : f32
    %156 = vector.broadcast %cst_20 : f32 to vector<8x128xf32>
    %157 = arith.addf %156, %155 : vector<8x128xf32>
    %158 = arith.divf %156, %157 : vector<8x128xf32>
    %159 = arith.select %5, %153, %158 : vector<8x128xi1>, vector<8x128xf32>
    %160 = vector.extract_strided_slice %159 {offsets = [0, 0], sizes = [8, 32], strides = [1, 1]} : vector<8x128xf32> to vector<8x32xf32>
    %161 = vector.extract_strided_slice %159 {offsets = [0, 32], sizes = [8, 32], strides = [1, 1]} : vector<8x128xf32> to vector<8x32xf32>
    %162 = vector.extract_strided_slice %159 {offsets = [0, 64], sizes = [8, 32], strides = [1, 1]} : vector<8x128xf32> to vector<8x32xf32>
    %163 = vector.extract_strided_slice %159 {offsets = [0, 96], sizes = [8, 32], strides = [1, 1]} : vector<8x128xf32> to vector<8x32xf32>
    %164 = arith.mulf %161, %148 : vector<8x32xf32>
    %165 = arith.mulf %160, %162 : vector<8x32xf32>
    %166 = arith.addf %164, %165 : vector<8x32xf32>
    %167 = math.tanh %166 : vector<8x32xf32>
    %168 = arith.mulf %163, %167 : vector<8x32xf32>
    %cst_21 = arith.constant dense<0.000000e+00> : vector<8x128xf32>
    %169 = tpu.matmul %168, %58, %cst_21 {dimension_numbers = #tpu.dot_dimension_numbers<[1], [0], [0], [1], [0, 0, 1, 1], [], []>} : vector<8x32xf32>, vector<32x128xf32>, vector<8x128xf32> -> vector<8x128xf32>
    %170 = arith.addf %50, %169 : vector<8x128xf32>
    %171 = math.tanh %170 : vector<8x128xf32>
    %172 = arith.negf %170 : vector<8x128xf32>
    %173 = math.exp %172 : vector<8x128xf32>
    %cst_22 = arith.constant 1.000000e+00 : f32
    %174 = vector.broadcast %cst_22 : f32 to vector<8x128xf32>
    %175 = arith.addf %174, %173 : vector<8x128xf32>
    %176 = arith.divf %174, %175 : vector<8x128xf32>
    %177 = arith.select %5, %171, %176 : vector<8x128xi1>, vector<8x128xf32>
    %178 = vector.extract_strided_slice %177 {offsets = [0, 0], sizes = [8, 32], strides = [1, 1]} : vector<8x128xf32> to vector<8x32xf32>
    %179 = vector.extract_strided_slice %177 {offsets = [0, 32], sizes = [8, 32], strides = [1, 1]} : vector<8x128xf32> to vector<8x32xf32>
    %180 = vector.extract_strided_slice %177 {offsets = [0, 64], sizes = [8, 32], strides = [1, 1]} : vector<8x128xf32> to vector<8x32xf32>
    %181 = vector.extract_strided_slice %177 {offsets = [0, 96], sizes = [8, 32], strides = [1, 1]} : vector<8x128xf32> to vector<8x32xf32>
    %182 = arith.mulf %179, %166 : vector<8x32xf32>
    %183 = arith.mulf %178, %180 : vector<8x32xf32>
    %184 = arith.addf %182, %183 : vector<8x32xf32>
    %185 = math.tanh %184 : vector<8x32xf32>
    %186 = arith.mulf %181, %185 : vector<8x32xf32>
    %cst_23 = arith.constant dense<0.000000e+00> : vector<8x128xf32>
    %187 = tpu.matmul %186, %58, %cst_23 {dimension_numbers = #tpu.dot_dimension_numbers<[1], [0], [0], [1], [0, 0, 1, 1], [], []>} : vector<8x32xf32>, vector<32x128xf32>, vector<8x128xf32> -> vector<8x128xf32>
    %188 = arith.addf %56, %187 : vector<8x128xf32>
    %189 = math.tanh %188 : vector<8x128xf32>
    %190 = arith.negf %188 : vector<8x128xf32>
    %191 = math.exp %190 : vector<8x128xf32>
    %cst_24 = arith.constant 1.000000e+00 : f32
    %192 = vector.broadcast %cst_24 : f32 to vector<8x128xf32>
    %193 = arith.addf %192, %191 : vector<8x128xf32>
    %194 = arith.divf %192, %193 : vector<8x128xf32>
    %195 = arith.select %5, %189, %194 : vector<8x128xi1>, vector<8x128xf32>
    %196 = vector.extract_strided_slice %195 {offsets = [0, 0], sizes = [8, 32], strides = [1, 1]} : vector<8x128xf32> to vector<8x32xf32>
    %197 = vector.extract_strided_slice %195 {offsets = [0, 32], sizes = [8, 32], strides = [1, 1]} : vector<8x128xf32> to vector<8x32xf32>
    %198 = vector.extract_strided_slice %195 {offsets = [0, 64], sizes = [8, 32], strides = [1, 1]} : vector<8x128xf32> to vector<8x32xf32>
    %199 = vector.extract_strided_slice %195 {offsets = [0, 96], sizes = [8, 32], strides = [1, 1]} : vector<8x128xf32> to vector<8x32xf32>
    %200 = arith.mulf %197, %184 : vector<8x32xf32>
    %201 = arith.mulf %196, %198 : vector<8x32xf32>
    %202 = arith.addf %200, %201 : vector<8x32xf32>
    %203 = math.tanh %202 : vector<8x32xf32>
    %204 = arith.mulf %199, %203 : vector<8x32xf32>
    %205 = tpu.concatenate %78, %96, %114, %132, %150, %168, %186, %204 in 0 : vector<8x32xf32>, vector<8x32xf32>, vector<8x32xf32>, vector<8x32xf32>, vector<8x32xf32>, vector<8x32xf32>, vector<8x32xf32>, vector<8x32xf32> -> vector<64x32xf32>
    %c0_25 = arith.constant 0 : index
    %c0_26 = arith.constant 0 : index
    %c0_27 = arith.constant 0 : index
    %206 = vector.load %arg3[%c0_25, %c0_26, %c0_27] : memref<1x32x128xf32, #tpu.memory_space<vmem>>, vector<1x32x128xf32>
    %207 = vector.shape_cast %206 : vector<1x32x128xf32> to vector<32x128xf32>
    %cst_28 = arith.constant dense<0.000000e+00> : vector<64x128xf32>
    %208 = tpu.matmul %205, %207, %cst_28 {dimension_numbers = #tpu.dot_dimension_numbers<[1], [0], [0], [1], [0, 0, 1, 1], [], []>} : vector<64x32xf32>, vector<32x128xf32>, vector<64x128xf32> -> vector<64x128xf32>
    %c1 = arith.constant 1 : index
    %c0_29 = arith.constant 0 : index
    %209 = vector.load %arg5[%c1, %c0_29] : memref<2x128xf32, #tpu.memory_space<vmem>>, vector<1x128xf32>
    %210 = vector.broadcast %209 : vector<1x128xf32> to vector<64x128xf32>
    %211 = arith.addf %208, %210 : vector<64x128xf32>
    %212 = vector.extract_strided_slice %211 {offsets = [0, 0], sizes = [8, 128], strides = [1, 1]} : vector<64x128xf32> to vector<8x128xf32>
    %213 = vector.extract_strided_slice %211 {offsets = [8, 0], sizes = [8, 128], strides = [1, 1]} : vector<64x128xf32> to vector<8x128xf32>
    %214 = vector.extract_strided_slice %211 {offsets = [16, 0], sizes = [8, 128], strides = [1, 1]} : vector<64x128xf32> to vector<8x128xf32>
    %215 = vector.extract_strided_slice %211 {offsets = [24, 0], sizes = [8, 128], strides = [1, 1]} : vector<64x128xf32> to vector<8x128xf32>
    %216 = vector.extract_strided_slice %211 {offsets = [32, 0], sizes = [8, 128], strides = [1, 1]} : vector<64x128xf32> to vector<8x128xf32>
    %217 = vector.extract_strided_slice %211 {offsets = [40, 0], sizes = [8, 128], strides = [1, 1]} : vector<64x128xf32> to vector<8x128xf32>
    %218 = vector.extract_strided_slice %211 {offsets = [48, 0], sizes = [8, 128], strides = [1, 1]} : vector<64x128xf32> to vector<8x128xf32>
    %219 = vector.extract_strided_slice %211 {offsets = [56, 0], sizes = [8, 128], strides = [1, 1]} : vector<64x128xf32> to vector<8x128xf32>
    %c1_30 = arith.constant 1 : index
    %c0_31 = arith.constant 0 : index
    %c0_32 = arith.constant 0 : index
    %220 = vector.load %arg4[%c1_30, %c0_31, %c0_32] : memref<2x32x128xf32, #tpu.memory_space<vmem>>, vector<1x32x128xf32>
    %221 = vector.shape_cast %220 : vector<1x32x128xf32> to vector<32x128xf32>
    %cst_33 = arith.constant 0.000000e+00 : f32
    %222 = vector.broadcast %cst_33 : f32 to vector<8x32xf32>
    %cst_34 = arith.constant 0.000000e+00 : f32
    %223 = vector.broadcast %cst_34 : f32 to vector<8x32xf32>
    %cst_35 = arith.constant dense<0.000000e+00> : vector<8x128xf32>
    %224 = tpu.matmul %222, %221, %cst_35 {dimension_numbers = #tpu.dot_dimension_numbers<[1], [0], [0], [1], [0, 0, 1, 1], [], []>} : vector<8x32xf32>, vector<32x128xf32>, vector<8x128xf32> -> vector<8x128xf32>
    %225 = arith.addf %212, %224 : vector<8x128xf32>
    %226 = math.tanh %225 : vector<8x128xf32>
    %227 = arith.negf %225 : vector<8x128xf32>
    %228 = math.exp %227 : vector<8x128xf32>
    %cst_36 = arith.constant 1.000000e+00 : f32
    %229 = vector.broadcast %cst_36 : f32 to vector<8x128xf32>
    %230 = arith.addf %229, %228 : vector<8x128xf32>
    %231 = arith.divf %229, %230 : vector<8x128xf32>
    %232 = arith.select %5, %226, %231 : vector<8x128xi1>, vector<8x128xf32>
    %233 = vector.extract_strided_slice %232 {offsets = [0, 0], sizes = [8, 32], strides = [1, 1]} : vector<8x128xf32> to vector<8x32xf32>
    %234 = vector.extract_strided_slice %232 {offsets = [0, 32], sizes = [8, 32], strides = [1, 1]} : vector<8x128xf32> to vector<8x32xf32>
    %235 = vector.extract_strided_slice %232 {offsets = [0, 64], sizes = [8, 32], strides = [1, 1]} : vector<8x128xf32> to vector<8x32xf32>
    %236 = vector.extract_strided_slice %232 {offsets = [0, 96], sizes = [8, 32], strides = [1, 1]} : vector<8x128xf32> to vector<8x32xf32>
    %237 = arith.mulf %234, %223 : vector<8x32xf32>
    %238 = arith.mulf %233, %235 : vector<8x32xf32>
    %239 = arith.addf %237, %238 : vector<8x32xf32>
    %240 = math.tanh %239 : vector<8x32xf32>
    %241 = arith.mulf %236, %240 : vector<8x32xf32>
    %cst_37 = arith.constant dense<0.000000e+00> : vector<8x128xf32>
    %242 = tpu.matmul %241, %221, %cst_37 {dimension_numbers = #tpu.dot_dimension_numbers<[1], [0], [0], [1], [0, 0, 1, 1], [], []>} : vector<8x32xf32>, vector<32x128xf32>, vector<8x128xf32> -> vector<8x128xf32>
    %243 = arith.addf %213, %242 : vector<8x128xf32>
    %244 = math.tanh %243 : vector<8x128xf32>
    %245 = arith.negf %243 : vector<8x128xf32>
    %246 = math.exp %245 : vector<8x128xf32>
    %cst_38 = arith.constant 1.000000e+00 : f32
    %247 = vector.broadcast %cst_38 : f32 to vector<8x128xf32>
    %248 = arith.addf %247, %246 : vector<8x128xf32>
    %249 = arith.divf %247, %248 : vector<8x128xf32>
    %250 = arith.select %5, %244, %249 : vector<8x128xi1>, vector<8x128xf32>
    %251 = vector.extract_strided_slice %250 {offsets = [0, 0], sizes = [8, 32], strides = [1, 1]} : vector<8x128xf32> to vector<8x32xf32>
    %252 = vector.extract_strided_slice %250 {offsets = [0, 32], sizes = [8, 32], strides = [1, 1]} : vector<8x128xf32> to vector<8x32xf32>
    %253 = vector.extract_strided_slice %250 {offsets = [0, 64], sizes = [8, 32], strides = [1, 1]} : vector<8x128xf32> to vector<8x32xf32>
    %254 = vector.extract_strided_slice %250 {offsets = [0, 96], sizes = [8, 32], strides = [1, 1]} : vector<8x128xf32> to vector<8x32xf32>
    %255 = arith.mulf %252, %239 : vector<8x32xf32>
    %256 = arith.mulf %251, %253 : vector<8x32xf32>
    %257 = arith.addf %255, %256 : vector<8x32xf32>
    %258 = math.tanh %257 : vector<8x32xf32>
    %259 = arith.mulf %254, %258 : vector<8x32xf32>
    %cst_39 = arith.constant dense<0.000000e+00> : vector<8x128xf32>
    %260 = tpu.matmul %259, %221, %cst_39 {dimension_numbers = #tpu.dot_dimension_numbers<[1], [0], [0], [1], [0, 0, 1, 1], [], []>} : vector<8x32xf32>, vector<32x128xf32>, vector<8x128xf32> -> vector<8x128xf32>
    %261 = arith.addf %214, %260 : vector<8x128xf32>
    %262 = math.tanh %261 : vector<8x128xf32>
    %263 = arith.negf %261 : vector<8x128xf32>
    %264 = math.exp %263 : vector<8x128xf32>
    %cst_40 = arith.constant 1.000000e+00 : f32
    %265 = vector.broadcast %cst_40 : f32 to vector<8x128xf32>
    %266 = arith.addf %265, %264 : vector<8x128xf32>
    %267 = arith.divf %265, %266 : vector<8x128xf32>
    %268 = arith.select %5, %262, %267 : vector<8x128xi1>, vector<8x128xf32>
    %269 = vector.extract_strided_slice %268 {offsets = [0, 0], sizes = [8, 32], strides = [1, 1]} : vector<8x128xf32> to vector<8x32xf32>
    %270 = vector.extract_strided_slice %268 {offsets = [0, 32], sizes = [8, 32], strides = [1, 1]} : vector<8x128xf32> to vector<8x32xf32>
    %271 = vector.extract_strided_slice %268 {offsets = [0, 64], sizes = [8, 32], strides = [1, 1]} : vector<8x128xf32> to vector<8x32xf32>
    %272 = vector.extract_strided_slice %268 {offsets = [0, 96], sizes = [8, 32], strides = [1, 1]} : vector<8x128xf32> to vector<8x32xf32>
    %273 = arith.mulf %270, %257 : vector<8x32xf32>
    %274 = arith.mulf %269, %271 : vector<8x32xf32>
    %275 = arith.addf %273, %274 : vector<8x32xf32>
    %276 = math.tanh %275 : vector<8x32xf32>
    %277 = arith.mulf %272, %276 : vector<8x32xf32>
    %cst_41 = arith.constant dense<0.000000e+00> : vector<8x128xf32>
    %278 = tpu.matmul %277, %221, %cst_41 {dimension_numbers = #tpu.dot_dimension_numbers<[1], [0], [0], [1], [0, 0, 1, 1], [], []>} : vector<8x32xf32>, vector<32x128xf32>, vector<8x128xf32> -> vector<8x128xf32>
    %279 = arith.addf %215, %278 : vector<8x128xf32>
    %280 = math.tanh %279 : vector<8x128xf32>
    %281 = arith.negf %279 : vector<8x128xf32>
    %282 = math.exp %281 : vector<8x128xf32>
    %cst_42 = arith.constant 1.000000e+00 : f32
    %283 = vector.broadcast %cst_42 : f32 to vector<8x128xf32>
    %284 = arith.addf %283, %282 : vector<8x128xf32>
    %285 = arith.divf %283, %284 : vector<8x128xf32>
    %286 = arith.select %5, %280, %285 : vector<8x128xi1>, vector<8x128xf32>
    %287 = vector.extract_strided_slice %286 {offsets = [0, 0], sizes = [8, 32], strides = [1, 1]} : vector<8x128xf32> to vector<8x32xf32>
    %288 = vector.extract_strided_slice %286 {offsets = [0, 32], sizes = [8, 32], strides = [1, 1]} : vector<8x128xf32> to vector<8x32xf32>
    %289 = vector.extract_strided_slice %286 {offsets = [0, 64], sizes = [8, 32], strides = [1, 1]} : vector<8x128xf32> to vector<8x32xf32>
    %290 = vector.extract_strided_slice %286 {offsets = [0, 96], sizes = [8, 32], strides = [1, 1]} : vector<8x128xf32> to vector<8x32xf32>
    %291 = arith.mulf %288, %275 : vector<8x32xf32>
    %292 = arith.mulf %287, %289 : vector<8x32xf32>
    %293 = arith.addf %291, %292 : vector<8x32xf32>
    %294 = math.tanh %293 : vector<8x32xf32>
    %295 = arith.mulf %290, %294 : vector<8x32xf32>
    %cst_43 = arith.constant dense<0.000000e+00> : vector<8x128xf32>
    %296 = tpu.matmul %295, %221, %cst_43 {dimension_numbers = #tpu.dot_dimension_numbers<[1], [0], [0], [1], [0, 0, 1, 1], [], []>} : vector<8x32xf32>, vector<32x128xf32>, vector<8x128xf32> -> vector<8x128xf32>
    %297 = arith.addf %216, %296 : vector<8x128xf32>
    %298 = math.tanh %297 : vector<8x128xf32>
    %299 = arith.negf %297 : vector<8x128xf32>
    %300 = math.exp %299 : vector<8x128xf32>
    %cst_44 = arith.constant 1.000000e+00 : f32
    %301 = vector.broadcast %cst_44 : f32 to vector<8x128xf32>
    %302 = arith.addf %301, %300 : vector<8x128xf32>
    %303 = arith.divf %301, %302 : vector<8x128xf32>
    %304 = arith.select %5, %298, %303 : vector<8x128xi1>, vector<8x128xf32>
    %305 = vector.extract_strided_slice %304 {offsets = [0, 0], sizes = [8, 32], strides = [1, 1]} : vector<8x128xf32> to vector<8x32xf32>
    %306 = vector.extract_strided_slice %304 {offsets = [0, 32], sizes = [8, 32], strides = [1, 1]} : vector<8x128xf32> to vector<8x32xf32>
    %307 = vector.extract_strided_slice %304 {offsets = [0, 64], sizes = [8, 32], strides = [1, 1]} : vector<8x128xf32> to vector<8x32xf32>
    %308 = vector.extract_strided_slice %304 {offsets = [0, 96], sizes = [8, 32], strides = [1, 1]} : vector<8x128xf32> to vector<8x32xf32>
    %309 = arith.mulf %306, %293 : vector<8x32xf32>
    %310 = arith.mulf %305, %307 : vector<8x32xf32>
    %311 = arith.addf %309, %310 : vector<8x32xf32>
    %312 = math.tanh %311 : vector<8x32xf32>
    %313 = arith.mulf %308, %312 : vector<8x32xf32>
    %cst_45 = arith.constant dense<0.000000e+00> : vector<8x128xf32>
    %314 = tpu.matmul %313, %221, %cst_45 {dimension_numbers = #tpu.dot_dimension_numbers<[1], [0], [0], [1], [0, 0, 1, 1], [], []>} : vector<8x32xf32>, vector<32x128xf32>, vector<8x128xf32> -> vector<8x128xf32>
    %315 = arith.addf %217, %314 : vector<8x128xf32>
    %316 = math.tanh %315 : vector<8x128xf32>
    %317 = arith.negf %315 : vector<8x128xf32>
    %318 = math.exp %317 : vector<8x128xf32>
    %cst_46 = arith.constant 1.000000e+00 : f32
    %319 = vector.broadcast %cst_46 : f32 to vector<8x128xf32>
    %320 = arith.addf %319, %318 : vector<8x128xf32>
    %321 = arith.divf %319, %320 : vector<8x128xf32>
    %322 = arith.select %5, %316, %321 : vector<8x128xi1>, vector<8x128xf32>
    %323 = vector.extract_strided_slice %322 {offsets = [0, 0], sizes = [8, 32], strides = [1, 1]} : vector<8x128xf32> to vector<8x32xf32>
    %324 = vector.extract_strided_slice %322 {offsets = [0, 32], sizes = [8, 32], strides = [1, 1]} : vector<8x128xf32> to vector<8x32xf32>
    %325 = vector.extract_strided_slice %322 {offsets = [0, 64], sizes = [8, 32], strides = [1, 1]} : vector<8x128xf32> to vector<8x32xf32>
    %326 = vector.extract_strided_slice %322 {offsets = [0, 96], sizes = [8, 32], strides = [1, 1]} : vector<8x128xf32> to vector<8x32xf32>
    %327 = arith.mulf %324, %311 : vector<8x32xf32>
    %328 = arith.mulf %323, %325 : vector<8x32xf32>
    %329 = arith.addf %327, %328 : vector<8x32xf32>
    %330 = math.tanh %329 : vector<8x32xf32>
    %331 = arith.mulf %326, %330 : vector<8x32xf32>
    %cst_47 = arith.constant dense<0.000000e+00> : vector<8x128xf32>
    %332 = tpu.matmul %331, %221, %cst_47 {dimension_numbers = #tpu.dot_dimension_numbers<[1], [0], [0], [1], [0, 0, 1, 1], [], []>} : vector<8x32xf32>, vector<32x128xf32>, vector<8x128xf32> -> vector<8x128xf32>
    %333 = arith.addf %218, %332 : vector<8x128xf32>
    %334 = math.tanh %333 : vector<8x128xf32>
    %335 = arith.negf %333 : vector<8x128xf32>
    %336 = math.exp %335 : vector<8x128xf32>
    %cst_48 = arith.constant 1.000000e+00 : f32
    %337 = vector.broadcast %cst_48 : f32 to vector<8x128xf32>
    %338 = arith.addf %337, %336 : vector<8x128xf32>
    %339 = arith.divf %337, %338 : vector<8x128xf32>
    %340 = arith.select %5, %334, %339 : vector<8x128xi1>, vector<8x128xf32>
    %341 = vector.extract_strided_slice %340 {offsets = [0, 0], sizes = [8, 32], strides = [1, 1]} : vector<8x128xf32> to vector<8x32xf32>
    %342 = vector.extract_strided_slice %340 {offsets = [0, 32], sizes = [8, 32], strides = [1, 1]} : vector<8x128xf32> to vector<8x32xf32>
    %343 = vector.extract_strided_slice %340 {offsets = [0, 64], sizes = [8, 32], strides = [1, 1]} : vector<8x128xf32> to vector<8x32xf32>
    %344 = vector.extract_strided_slice %340 {offsets = [0, 96], sizes = [8, 32], strides = [1, 1]} : vector<8x128xf32> to vector<8x32xf32>
    %345 = arith.mulf %342, %329 : vector<8x32xf32>
    %346 = arith.mulf %341, %343 : vector<8x32xf32>
    %347 = arith.addf %345, %346 : vector<8x32xf32>
    %348 = math.tanh %347 : vector<8x32xf32>
    %349 = arith.mulf %344, %348 : vector<8x32xf32>
    %cst_49 = arith.constant dense<0.000000e+00> : vector<8x128xf32>
    %350 = tpu.matmul %349, %221, %cst_49 {dimension_numbers = #tpu.dot_dimension_numbers<[1], [0], [0], [1], [0, 0, 1, 1], [], []>} : vector<8x32xf32>, vector<32x128xf32>, vector<8x128xf32> -> vector<8x128xf32>
    %351 = arith.addf %219, %350 : vector<8x128xf32>
    %352 = math.tanh %351 : vector<8x128xf32>
    %353 = arith.negf %351 : vector<8x128xf32>
    %354 = math.exp %353 : vector<8x128xf32>
    %cst_50 = arith.constant 1.000000e+00 : f32
    %355 = vector.broadcast %cst_50 : f32 to vector<8x128xf32>
    %356 = arith.addf %355, %354 : vector<8x128xf32>
    %357 = arith.divf %355, %356 : vector<8x128xf32>
    %358 = arith.select %5, %352, %357 : vector<8x128xi1>, vector<8x128xf32>
    %359 = vector.extract_strided_slice %358 {offsets = [0, 0], sizes = [8, 32], strides = [1, 1]} : vector<8x128xf32> to vector<8x32xf32>
    %360 = vector.extract_strided_slice %358 {offsets = [0, 32], sizes = [8, 32], strides = [1, 1]} : vector<8x128xf32> to vector<8x32xf32>
    %361 = vector.extract_strided_slice %358 {offsets = [0, 64], sizes = [8, 32], strides = [1, 1]} : vector<8x128xf32> to vector<8x32xf32>
    %362 = vector.extract_strided_slice %358 {offsets = [0, 96], sizes = [8, 32], strides = [1, 1]} : vector<8x128xf32> to vector<8x32xf32>
    %363 = arith.mulf %360, %347 : vector<8x32xf32>
    %364 = arith.mulf %359, %361 : vector<8x32xf32>
    %365 = arith.addf %363, %364 : vector<8x32xf32>
    %366 = math.tanh %365 : vector<8x32xf32>
    %367 = arith.mulf %362, %366 : vector<8x32xf32>
    %c0_51 = arith.constant 0 : index
    %c0_52 = arith.constant 0 : index
    %368 = vector.load %arg6[%c0_51, %c0_52] : memref<8x32xf32, #tpu.memory_space<vmem>>, vector<8x32xf32>
    tpu.vector_store %arg6[%c0_51, %c0_52], %367 {strides = array<i32>} : memref<8x32xf32, #tpu.memory_space<vmem>>, vector<8x32xf32>,
    return
  }
  func.func @transform_0(%arg0: i32) -> (i32, i32) {
    %c0_i32 = arith.constant 0 : i32
    %c0_i32_0 = arith.constant 0 : i32
    return %arg0, %c0_i32 : i32, i32
  }
  func.func @transform_1(%arg0: i32) -> (i32, i32) {
    %c0_i32 = arith.constant 0 : i32
    %c0_i32_0 = arith.constant 0 : i32
    %c0_i32_1 = arith.constant 0 : i32
    return %c0_i32, %c0_i32_0 : i32, i32
  }
  func.func @transform_2(%arg0: i32) -> (i32, i32, i32) {
    %c0_i32 = arith.constant 0 : i32
    %c0_i32_0 = arith.constant 0 : i32
    %c0_i32_1 = arith.constant 0 : i32
    %c0_i32_2 = arith.constant 0 : i32
    return %c0_i32, %c0_i32_0, %c0_i32_1 : i32, i32, i32
  }
  func.func @transform_3(%arg0: i32) -> (i32, i32, i32) {
    %c0_i32 = arith.constant 0 : i32
    %c0_i32_0 = arith.constant 0 : i32
    %c0_i32_1 = arith.constant 0 : i32
    %c0_i32_2 = arith.constant 0 : i32
    return %c0_i32, %c0_i32_0, %c0_i32_1 : i32, i32, i32
  }
  func.func @transform_4(%arg0: i32) -> (i32, i32) {
    %c0_i32 = arith.constant 0 : i32
    %c0_i32_0 = arith.constant 0 : i32
    %c0_i32_1 = arith.constant 0 : i32
    return %c0_i32, %c0_i32_0 : i32, i32
  }
  func.func @transform_5(%arg0: i32) -> (i32, i32) {
    %c0_i32 = arith.constant 0 : i32
    %c0_i32_0 = arith.constant 0 : i32
    return %arg0, %c0_i32 : i32, i32
  }
}

</mosaic_0001>

<llo_original>
// kernel: tpu_custom_call.1
$region0: #{tpu_custom_call.1}
  #allocation0 [shape = 'u32[]', space=smem, size = 0x4, offset = 0x4, fixed_abs, tag = 'smem constant byte address 0x4 - core index']
  #allocation1 [shape = 'u32[144,128]{1,0:T(1,128)}', space=vmem, size = 0x12000, scoped, tag = 'internal scratch']
  %s0 = inlined_call_operand.hbm [shape: f32[8,8], index: 0, kind: input, shape index: {}]
  %s1 = inlined_call_operand.vmem [shape: f32[1,128], index: 1, kind: input, shape index: {}]
  %s2 = inlined_call_operand.hbm [shape: f32[1,32,128], index: 2, kind: input, shape index: {}]
  %s3 = inlined_call_operand.hbm [shape: f32[2,32,128], index: 3, kind: input, shape index: {}]
  %s4 = inlined_call_operand.vmem [shape: f32[2,128], index: 4, kind: input, shape index: {}]
  %s5 = inlined_call_operand.hbm [shape: f32[8,32], index: 5, kind: output, shape index: {}]
  %s6 = sld [smem:[#allocation0]]
  $region42: #{tpu_custom_call.1} parent=0
    _
  %s8 = ssub.s32 1, %s6
  %s9 = scalar_select 0, %s8, %s6
  $region1: #{tpu_custom_call.1} parent=0
    #allocation2 [shape = 'u8[4096]{0}', space=vmem, size = 0x1000, scoped, tag = 'input window, operand 0, single buffered']
    #allocation3 [shape = 's32[1]{0}', space=sflag, size = 0x4, scoped, tag = 'scoped memory for tpu_custom_call.1']
    #allocation4 [shape = 's32[1]{0}', space=sflag, size = 0x4, scoped, tag = 'scoped memory for tpu_custom_call.1']
    #allocation5 [shape = 'u8[16384]{0}', space=vmem, size = 0x4000, scoped, tag = 'input window, operand 2, single buffered']
    #allocation6 [shape = 's32[1]{0}', space=sflag, size = 0x4, scoped, tag = 'scoped memory for tpu_custom_call.1']
    #allocation7 [shape = 'u8[32768]{0}', space=vmem, size = 0x8000, scoped, tag = 'input window, operand 3, single buffered']
    #allocation8 [shape = 'u8[4096]{0}', space=vmem, size = 0x1000, scoped, tag = 'output window, operand 0, single buffered']
    %10 = vsyncpa [#allocation3], 0
    %11 = vsyncpa [#allocation6], 0
    %12 = vsyncpa [#allocation4], 0
    // Predicated region
    $region2: #{tpu_custom_call.1} parent=1 // pred_check
      _
    $region3: #{tpu_custom_call.1} parent=1 // pred_check_branch
      %14 = sbr.rel (0) target = $region5
    $region4: #{tpu_custom_call.1} parent=1 // pred_region
      %s16 = ssub.s32 128, 128
      %17 = vsyncadd [#allocation3], %s16
      %s19 = sshll.u32 [#allocation2], 4
      %s20 = int_to_ptr.vmem [resolvable:$true] %s19
      %22 = dma.hbm_to_vmem [thread:$0]  %s0, 128, %s20, [#allocation3]
    $region5: #{tpu_custom_call.1} parent=1 // pred_fallthru
      _
    // Predicated region
    $region6: #{tpu_custom_call.1} parent=1 // pred_check
      _
    $region7: #{tpu_custom_call.1} parent=1 // pred_check_branch
      %24 = sbr.rel (0) target = $region9
    $region8: #{tpu_custom_call.1} parent=1 // pred_region
      _
    $region9: #{tpu_custom_call.1} parent=1 // pred_fallthru
      _
    // Predicated region
    $region10: #{tpu_custom_call.1} parent=1 // pred_check
      _
    $region11: #{tpu_custom_call.1} parent=1 // pred_check_branch
      %26 = sbr.rel (0) target = $region13
    $region12: #{tpu_custom_call.1} parent=1 // pred_region
      %s28 = ssub.s32 512, 512
      %29 = vsyncadd [#allocation6], %s28
      %s30 = sshll.u32 [#allocation5], 4
      %s31 = int_to_ptr.vmem [resolvable:$true] %s30
      %36 = dma.hbm_to_vmem [thread:$0]  %s2, 512, %s31, [#allocation6], 128, 128, 8
    $region13: #{tpu_custom_call.1} parent=1 // pred_fallthru
      _
    // Predicated region
    $region14: #{tpu_custom_call.1} parent=1 // pred_check
      _
    $region15: #{tpu_custom_call.1} parent=1 // pred_check_branch
      %38 = sbr.rel (0) target = $region17
    $region16: #{tpu_custom_call.1} parent=1 // pred_region
      %s40 = ssub.s32 1024, 1024
      %41 = vsyncadd [#allocation6], %s40
      %s42 = sshll.u32 [#allocation7], 4
      %s43 = int_to_ptr.vmem [resolvable:$true] %s42
      %48 = dma.hbm_to_vmem [thread:$0]  %s3, 1024, %s43, [#allocation6], 128, 128, 8
    $region17: #{tpu_custom_call.1} parent=1 // pred_fallthru
      _
    // Predicated region
    $region18: #{tpu_custom_call.1} parent=1 // pred_check
      _
    $region19: #{tpu_custom_call.1} parent=1 // pred_check_branch
      %50 = sbr.rel (0) target = $region21
    $region20: #{tpu_custom_call.1} parent=1 // pred_region
      _
    $region21: #{tpu_custom_call.1} parent=1 // pred_fallthru
      _
    // Predicated region
    $region22: #{tpu_custom_call.1} parent=1 // pred_check
      _
    $region23: #{tpu_custom_call.1} parent=1 // pred_check_branch
      %52 = sbr.rel (0) target = $region25
    $region24: #{tpu_custom_call.1} parent=1 // pred_region
      %53 = dma.done [#allocation3], 128
    $region25: #{tpu_custom_call.1} parent=1 // pred_fallthru
      _
    // Predicated region
    $region26: #{tpu_custom_call.1} parent=1 // pred_check
      _
    $region27: #{tpu_custom_call.1} parent=1 // pred_check_branch
      %55 = sbr.rel (0) target = $region29
    $region28: #{tpu_custom_call.1} parent=1 // pred_region
      %56 = dma.done [#allocation6], 512
    $region29: #{tpu_custom_call.1} parent=1 // pred_fallthru
      _
    // Predicated region
    $region30: #{tpu_custom_call.1} parent=1 // pred_check
      _
    $region31: #{tpu_custom_call.1} parent=1 // pred_check_branch
      %58 = sbr.rel (0) target = $region33
    $region32: #{tpu_custom_call.1} parent=1 // pred_region
      %59 = dma.done [#allocation6], 1024
    $region33: #{tpu_custom_call.1} parent=1 // pred_fallthru
      _
    %v60 = vlaneseq
    %v61 = vand.u32 %v60, 127
    %vm62 = vcmp.ge.s32.totalorder %v61, 64
    %vm63 = vcmp.lt.s32.totalorder %v61, 96
    %vm64 = vmand %vm62, %vm63
    %v65 = vld [vmem:[#allocation2] sm:$0xff]
    %v66 = vld [vmem:[%s1] sm:$0x1]
    %v67 = vld [vmem:[%s4] sm:$0x1]
    %69 = vset.pattern.permute.xlu0 0
    %70 = vperm.xlu0 %69, %v65
    %v71 = vpop.permute.xlu0 %70
    %v74 = vlaneseq
    %v75 = vshrl.u32 %v74, 7
    %v76 = vsub.s32 0, %v75
    %v77 = vrot.slane %v66, %v76
    %v79 = vmul.f32 %v71, %v77
    %v80 = vlaneseq
    %v81 = vshrl.u32 %v80, 7
    %v82 = vsub.s32 0, %v81
    %v83 = vrot.slane %v67, %v82
    %v84 = vadd.f32 %v79, %v83
    %85 = vset.pattern.permute.xlu0 1
    %86 = vperm.xlu0 %85, %v65
    %v87 = vpop.permute.xlu0 %86
    %v89 = vmul.f32 %v87, %v77
    %v90 = vadd.f32 %v89, %v83
    %91 = vset.pattern.permute.xlu0 2
    %92 = vperm.xlu0 %91, %v65
    %v93 = vpop.permute.xlu0 %92
    %v95 = vmul.f32 %v93, %v77
    %v96 = vadd.f32 %v95, %v83
    %97 = vset.pattern.permute.xlu0 3
    %98 = vperm.xlu0 %97, %v65
    %v99 = vpop.permute.xlu0 %98
    %v101 = vmul.f32 %v99, %v77
    %v102 = vadd.f32 %v101, %v83
    %103 = vset.pattern.permute.xlu0 4
    %104 = vperm.xlu0 %103, %v65
    %v105 = vpop.permute.xlu0 %104
    %v107 = vmul.f32 %v105, %v77
    %v108 = vadd.f32 %v107, %v83
    %109 = vset.pattern.permute.xlu0 5
    %110 = vperm.xlu0 %109, %v65
    %v111 = vpop.permute.xlu0 %110
    %v113 = vmul.f32 %v111, %v77
    %v114 = vadd.f32 %v113, %v83
    %115 = vset.pattern.permute.xlu0 6
    %116 = vperm.xlu0 %115, %v65
    %v117 = vpop.permute.xlu0 %116
    %v119 = vmul.f32 %v117, %v77
    %v120 = vadd.f32 %v119, %v83
    %121 = vset.pattern.permute.xlu0 7
    %122 = vperm.xlu0 %121, %v65
    %v123 = vpop.permute.xlu0 %122
    %v125 = vmul.f32 %v123, %v77
    %v126 = vadd.f32 %v125, %v83
    %v127 = vld [vmem:[#allocation7] sm:$0xff]
    %v128 = vld [vmem:[#allocation7 + $0x8] sm:$0xff]
    %v129 = vld [vmem:[#allocation7 + $0x10] sm:$0xff]
    %v130 = vld [vmem:[#allocation7 + $0x18] sm:$0xff]
    %vm131 = vcmask 261120
    %v133 = vsel %vm131, 0.0, 0
    %135 = vmatprep.subr.mxu0 0.0
    %136 = vmatpush1.msra.mxu0 %v127
    %137 = vmatprep.subr.mxu0 0.0
    %138 = vmatpush1.msra.mxu0 %v128
    %139 = vmatprep.subr.mxu0 0.0
    %140 = vmatpush1.msra.mxu0 %v129
    %141 = vmatprep.subr.mxu0 0.0
    %142 = vmatpush1.msra.mxu0 %v130
    %143 = vmatprep.subr.mxu0 0.0
    %144 = vmatpush1.msra.mxu0 0.0
    %145 = vmatprep.subr.mxu0 0.0
    %146 = vmatpush1.msra.mxu0 0.0
    %147 = vmatprep.subr.mxu0 0.0
    %148 = vmatpush1.msra.mxu0 0.0
    %149 = vmatprep.subr.mxu0 0.0
    %150 = vmatpush1.msra.mxu0 0.0
    %151 = vmatprep.subr.mxu0 0.0
    %152 = vmatpush1.msra.mxu0 0.0
    %153 = vmatprep.subr.mxu0 0.0
    %154 = vmatpush1.msra.mxu0 0.0
    %155 = vmatprep.subr.mxu0 0.0
    %156 = vmatpush1.msra.mxu0 0.0
    %157 = vmatprep.subr.mxu0 0.0
    %158 = vmatpush1.msra.mxu0 0.0
    %159 = vmatprep.subr.mxu0 0.0
    %160 = vmatpush1.msra.mxu0 0.0
    %161 = vmatprep.subr.mxu0 0.0
    %162 = vmatpush1.msra.mxu0 0.0
    %163 = vmatprep.subr.mxu0 0.0
    %164 = vmatpush1.msra.mxu0 0.0
    %165 = vmatprep.subr.mxu0 0.0
    %166 = vmatpush1.msra.mxu0 0.0
    %167 = vmatprep.subr.mxu0 0.0
    %168 = vmatpush1.msra.mxu0 0.0
    %169 = vmatprep.subr.mxu0 0.0
    %170 = vmatpush1.msra.mxu0 0.0
    %171 = vmatprep.subr.mxu0 0.0
    %172 = vmatpush1.msra.mxu0 0.0
    %173 = vmatprep.subr.mxu0 0.0
    %174 = vmatpush1.msra.mxu0 0.0
    %175 = vmatprep.subr.mxu0 0.0
    %176 = vmatpush1.msra.mxu0 0.0
    %177 = vmatprep.subr.mxu0 0.0
    %178 = vmatpush1.msra.mxu0 0.0
    %179 = vmatprep.subr.mxu0 0.0
    %180 = vmatpush1.msra.mxu0 0.0
    %181 = vmatprep.subr.mxu0 0.0
    %182 = vmatpush1.msra.mxu0 0.0
    %183 = vmatprep.subr.mxu0 0.0
    %184 = vmatpush1.msra.mxu0 0.0
    %185 = vmatprep.subr.mxu0 0.0
    %186 = vmatpush1.msra.mxu0 0.0
    %187 = vmatprep.subr.mxu0 0.0
    %188 = vmatpush1.msra.mxu0 0.0
    %189 = vmatprep.subr.mxu0 0.0
    %190 = vmatpush1.msra.mxu0 0.0
    %191 = vmatprep.subr.mxu0 0.0
    %192 = vmatpush1.msra.mxu0 0.0
    %193 = vmatprep.subr.mxu0 0.0
    %194 = vmatpush1.msra.mxu0 0.0
    %195 = vmatprep.subr.mxu0 0.0
    %196 = vmatpush1.msra.mxu0 0.0
    %197 = vmatprep.subr.mxu0 0.0
    %198 = vmatpush1.msra.mxu0 0.0
    %199 = vmatprep.mubr.f32.mxu0 0.0
    %200 = vmatmul.mubr.f32.gmra.mrb[0].mxu0 %v133
    %v201 = vpop.f32.mrb[0].mxu0
    %v202 = vadd.f32 0.0, %v201
    %v203 = vpop.f32.mrb[0].mxu0
    %204 = vdwg.mxu0
    %v205 = vadd.f32 %v84, %v202
    %v206 = vtanh.pop %v205
    %v207 = vxor.u32 %v205, 2147483648
    %v208 = vmul.f32 %v207, 1.442695
    %v209 = vpow.pop %v208
    %v210 = vadd.f32 %v209, 1.0
    %v211 = vrcp.pop %v210
    %v212 = vmul.f32 1.0, %v211
    %v213 = vsel %vm64, %v206, %v212
    %v214 = vmul.f32 %v213, 0.0
    %216 = vrot.lane.b32.xlu0 %v213, 64
    %v217 = vpop.permute.xlu0 %216
    %v219 = vmul.f32 %v213, %v217
    %221 = vrot.lane.b32.xlu0 %v219, 32
    %v222 = vpop.permute.xlu0 %221
    %v224 = vadd.f32 %v214, %v222
    %v225 = vtanh.pop %v224
    %227 = vrot.lane.b32.xlu0 %v225, 64
    %v228 = vpop.permute.xlu0 %227
    %v230 = vmul.f32 %v213, %v228
    %232 = vrot.lane.b32.xlu0 %v230, 32
    %v233 = vpop.permute.xlu0 %232
    %v234 = vsel %vm131, %v233, 0
    %236 = vmatprep.subr.mxu0 0.0
    %237 = vmatpush1.msra.mxu0 %v127
    %238 = vmatprep.subr.mxu0 0.0
    %239 = vmatpush1.msra.mxu0 %v128
    %240 = vmatprep.subr.mxu0 0.0
    %241 = vmatpush1.msra.mxu0 %v129
    %242 = vmatprep.subr.mxu0 0.0
    %243 = vmatpush1.msra.mxu0 %v130
    %244 = vmatprep.subr.mxu0 0.0
    %245 = vmatpush1.msra.mxu0 0.0
    %246 = vmatprep.subr.mxu0 0.0
    %247 = vmatpush1.msra.mxu0 0.0
    %248 = vmatprep.subr.mxu0 0.0
    %249 = vmatpush1.msra.mxu0 0.0
    %250 = vmatprep.subr.mxu0 0.0
    %251 = vmatpush1.msra.mxu0 0.0
    %252 = vmatprep.subr.mxu0 0.0
    %253 = vmatpush1.msra.mxu0 0.0
    %254 = vmatprep.subr.mxu0 0.0
    %255 = vmatpush1.msra.mxu0 0.0
    %256 = vmatprep.subr.mxu0 0.0
    %257 = vmatpush1.msra.mxu0 0.0
    %258 = vmatprep.subr.mxu0 0.0
    %259 = vmatpush1.msra.mxu0 0.0
    %260 = vmatprep.subr.mxu0 0.0
    %261 = vmatpush1.msra.mxu0 0.0
    %262 = vmatprep.subr.mxu0 0.0
    %263 = vmatpush1.msra.mxu0 0.0
    %264 = vmatprep.subr.mxu0 0.0
    %265 = vmatpush1.msra.mxu0 0.0
    %266 = vmatprep.subr.mxu0 0.0
    %267 = vmatpush1.msra.mxu0 0.0
    %268 = vmatprep.subr.mxu0 0.0
    %269 = vmatpush1.msra.mxu0 0.0
    %270 = vmatprep.subr.mxu0 0.0
    %271 = vmatpush1.msra.mxu0 0.0
    %272 = vmatprep.subr.mxu0 0.0
    %273 = vmatpush1.msra.mxu0 0.0
    %274 = vmatprep.subr.mxu0 0.0
    %275 = vmatpush1.msra.mxu0 0.0
    %276 = vmatprep.subr.mxu0 0.0
    %277 = vmatpush1.msra.mxu0 0.0
    %278 = vmatprep.subr.mxu0 0.0
    %279 = vmatpush1.msra.mxu0 0.0
    %280 = vmatprep.subr.mxu0 0.0
    %281 = vmatpush1.msra.mxu0 0.0
    %282 = vmatprep.subr.mxu0 0.0
    %283 = vmatpush1.msra.mxu0 0.0
    %284 = vmatprep.subr.mxu0 0.0
    %285 = vmatpush1.msra.mxu0 0.0
    %286 = vmatprep.subr.mxu0 0.0
    %287 = vmatpush1.msra.mxu0 0.0
    %288 = vmatprep.subr.mxu0 0.0
    %289 = vmatpush1.msra.mxu0 0.0
    %290 = vmatprep.subr.mxu0 0.0
    %291 = vmatpush1.msra.mxu0 0.0
    %292 = vmatprep.subr.mxu0 0.0
    %293 = vmatpush1.msra.mxu0 0.0
    %294 = vmatprep.subr.mxu0 0.0
    %295 = vmatpush1.msra.mxu0 0.0
    %296 = vmatprep.subr.mxu0 0.0
    %297 = vmatpush1.msra.mxu0 0.0
    %298 = vmatprep.subr.mxu0 0.0
    %299 = vmatpush1.msra.mxu0 0.0
    %300 = vmatprep.mubr.f32.mxu0 0.0
    %301 = vmatmul.mubr.f32.gmra.mrb[0].mxu0 %v234
    %v302 = vpop.f32.mrb[0].mxu0
    %v303 = vadd.f32 0.0, %v302
    %v304 = vpop.f32.mrb[0].mxu0
    %305 = vdwg.mxu0
    %v306 = vadd.f32 %v90, %v303
    %v307 = vtanh.pop %v306
    %v308 = vxor.u32 %v306, 2147483648
    %v309 = vmul.f32 %v308, 1.442695
    %v310 = vpow.pop %v309
    %v311 = vadd.f32 %v310, 1.0
    %v312 = vrcp.pop %v311
    %v313 = vmul.f32 1.0, %v312
    %v314 = vsel %vm64, %v307, %v313
    %v315 = vmul.f32 %v314, %v224
    %317 = vrot.lane.b32.xlu0 %v314, 64
    %v318 = vpop.permute.xlu0 %317
    %v320 = vmul.f32 %v314, %v318
    %322 = vrot.lane.b32.xlu0 %v320, 32
    %v323 = vpop.permute.xlu0 %322
    %v325 = vadd.f32 %v315, %v323
    %v326 = vtanh.pop %v325
    %328 = vrot.lane.b32.xlu0 %v326, 64
    %v329 = vpop.permute.xlu0 %328
    %v331 = vmul.f32 %v314, %v329
    %333 = vrot.lane.b32.xlu0 %v331, 32
    %v334 = vpop.permute.xlu0 %333
    %v335 = vsel %vm131, %v334, 0
    %337 = vmatprep.subr.mxu0 0.0
    %338 = vmatpush1.msra.mxu0 %v127
    %339 = vmatprep.subr.mxu0 0.0
    %340 = vmatpush1.msra.mxu0 %v128
    %341 = vmatprep.subr.mxu0 0.0
    %342 = vmatpush1.msra.mxu0 %v129
    %343 = vmatprep.subr.mxu0 0.0
    %344 = vmatpush1.msra.mxu0 %v130
    %345 = vmatprep.subr.mxu0 0.0
    %346 = vmatpush1.msra.mxu0 0.0
    %347 = vmatprep.subr.mxu0 0.0
    %348 = vmatpush1.msra.mxu0 0.0
    %349 = vmatprep.subr.mxu0 0.0
    %350 = vmatpush1.msra.mxu0 0.0
    %351 = vmatprep.subr.mxu0 0.0
    %352 = vmatpush1.msra.mxu0 0.0
    %353 = vmatprep.subr.mxu0 0.0
    %354 = vmatpush1.msra.mxu0 0.0
    %355 = vmatprep.subr.mxu0 0.0
    %356 = vmatpush1.msra.mxu0 0.0
    %357 = vmatprep.subr.mxu0 0.0
    %358 = vmatpush1.msra.mxu0 0.0
    %359 = vmatprep.subr.mxu0 0.0
    %360 = vmatpush1.msra.mxu0 0.0
    %361 = vmatprep.subr.mxu0 0.0
    %362 = vmatpush1.msra.mxu0 0.0
    %363 = vmatprep.subr.mxu0 0.0
    %364 = vmatpush1.msra.mxu0 0.0
    %365 = vmatprep.subr.mxu0 0.0
    %366 = vmatpush1.msra.mxu0 0.0
    %367 = vmatprep.subr.mxu0 0.0
    %368 = vmatpush1.msra.mxu0 0.0
    %369 = vmatprep.subr.mxu0 0.0
    %370 = vmatpush1.msra.mxu0 0.0
    %371 = vmatprep.subr.mxu0 0.0
    %372 = vmatpush1.msra.mxu0 0.0
    %373 = vmatprep.subr.mxu0 0.0
    %374 = vmatpush1.msra.mxu0 0.0
    %375 = vmatprep.subr.mxu0 0.0
    %376 = vmatpush1.msra.mxu0 0.0
    %377 = vmatprep.subr.mxu0 0.0
    %378 = vmatpush1.msra.mxu0 0.0
    %379 = vmatprep.subr.mxu0 0.0
    %380 = vmatpush1.msra.mxu0 0.0
    %381 = vmatprep.subr.mxu0 0.0
    %382 = vmatpush1.msra.mxu0 0.0
    %383 = vmatprep.subr.mxu0 0.0
    %384 = vmatpush1.msra.mxu0 0.0
    %385 = vmatprep.subr.mxu0 0.0
    %386 = vmatpush1.msra.mxu0 0.0
    %387 = vmatprep.subr.mxu0 0.0
    %388 = vmatpush1.msra.mxu0 0.0
    %389 = vmatprep.subr.mxu0 0.0
    %390 = vmatpush1.msra.mxu0 0.0
    %391 = vmatprep.subr.mxu0 0.0
    %392 = vmatpush1.msra.mxu0 0.0
    %393 = vmatprep.subr.mxu0 0.0
    %394 = vmatpush1.msra.mxu0 0.0
    %395 = vmatprep.subr.mxu0 0.0
    %396 = vmatpush1.msra.mxu0 0.0
    %397 = vmatprep.subr.mxu0 0.0
    %398 = vmatpush1.msra.mxu0 0.0
    %399 = vmatprep.subr.mxu0 0.0
    %400 = vmatpush1.msra.mxu0 0.0
    %401 = vmatprep.mubr.f32.mxu0 0.0
    %402 = vmatmul.mubr.f32.gmra.mrb[0].mxu0 %v335
    %v403 = vpop.f32.mrb[0].mxu0
    %v404 = vadd.f32 0.0, %v403
    %v405 = vpop.f32.mrb[0].mxu0
    %406 = vdwg.mxu0
    %v407 = vadd.f32 %v96, %v404
    %v408 = vtanh.pop %v407
    %v409 = vxor.u32 %v407, 2147483648
    %v410 = vmul.f32 %v409, 1.442695
    %v411 = vpow.pop %v410
    %v412 = vadd.f32 %v411, 1.0
    %v413 = vrcp.pop %v412
    %v414 = vmul.f32 1.0, %v413
    %v415 = vsel %vm64, %v408, %v414
    %v416 = vmul.f32 %v415, %v325
    %418 = vrot.lane.b32.xlu0 %v415, 64
    %v419 = vpop.permute.xlu0 %418
    %v421 = vmul.f32 %v415, %v419
    %423 = vrot.lane.b32.xlu0 %v421, 32
    %v424 = vpop.permute.xlu0 %423
    %v426 = vadd.f32 %v416, %v424
    %v427 = vtanh.pop %v426
    %429 = vrot.lane.b32.xlu0 %v427, 64
    %v430 = vpop.permute.xlu0 %429
    %v432 = vmul.f32 %v415, %v430
    %434 = vrot.lane.b32.xlu0 %v432, 32
    %v435 = vpop.permute.xlu0 %434
    %v436 = vsel %vm131, %v435, 0
    %438 = vmatprep.subr.mxu0 0.0
    %439 = vmatpush1.msra.mxu0 %v127
    %440 = vmatprep.subr.mxu0 0.0
    %441 = vmatpush1.msra.mxu0 %v128
    %442 = vmatprep.subr.mxu0 0.0
    %443 = vmatpush1.msra.mxu0 %v129
    %444 = vmatprep.subr.mxu0 0.0
    %445 = vmatpush1.msra.mxu0 %v130
    %446 = vmatprep.subr.mxu0 0.0
    %447 = vmatpush1.msra.mxu0 0.0
    %448 = vmatprep.subr.mxu0 0.0
    %449 = vmatpush1.msra.mxu0 0.0
    %450 = vmatprep.subr.mxu0 0.0
    %451 = vmatpush1.msra.mxu0 0.0
    %452 = vmatprep.subr.mxu0 0.0
    %453 = vmatpush1.msra.mxu0 0.0
    %454 = vmatprep.subr.mxu0 0.0
    %455 = vmatpush1.msra.mxu0 0.0
    %456 = vmatprep.subr.mxu0 0.0
    %457 = vmatpush1.msra.mxu0 0.0
    %458 = vmatprep.subr.mxu0 0.0
    %459 = vmatpush1.msra.mxu0 0.0
    %460 = vmatprep.subr.mxu0 0.0
    %461 = vmatpush1.msra.mxu0 0.0
    %462 = vmatprep.subr.mxu0 0.0
    %463 = vmatpush1.msra.mxu0 0.0
    %464 = vmatprep.subr.mxu0 0.0
    %465 = vmatpush1.msra.mxu0 0.0
    %466 = vmatprep.subr.mxu0 0.0
    %467 = vmatpush1.msra.mxu0 0.0
    %468 = vmatprep.subr.mxu0 0.0
    %469 = vmatpush1.msra.mxu0 0.0
    %470 = vmatprep.subr.mxu0 0.0
    %471 = vmatpush1.msra.mxu0 0.0
    %472 = vmatprep.subr.mxu0 0.0
    %473 = vmatpush1.msra.mxu0 0.0
    %474 = vmatprep.subr.mxu0 0.0
    %475 = vmatpush1.msra.mxu0 0.0
    %476 = vmatprep.subr.mxu0 0.0
    %477 = vmatpush1.msra.mxu0 0.0
    %478 = vmatprep.subr.mxu0 0.0
    %479 = vmatpush1.msra.mxu0 0.0
    %480 = vmatprep.subr.mxu0 0.0
    %481 = vmatpush1.msra.mxu0 0.0
    %482 = vmatprep.subr.mxu0 0.0
    %483 = vmatpush1.msra.mxu0 0.0
    %484 = vmatprep.subr.mxu0 0.0
    %485 = vmatpush1.msra.mxu0 0.0
    %486 = vmatprep.subr.mxu0 0.0
    %487 = vmatpush1.msra.mxu0 0.0
    %488 = vmatprep.subr.mxu0 0.0
    %489 = vmatpush1.msra.mxu0 0.0
    %490 = vmatprep.subr.mxu0 0.0
    %491 = vmatpush1.msra.mxu0 0.0
    %492 = vmatprep.subr.mxu0 0.0
    %493 = vmatpush1.msra.mxu0 0.0
    %494 = vmatprep.subr.mxu0 0.0
    %495 = vmatpush1.msra.mxu0 0.0
    %496 = vmatprep.subr.mxu0 0.0
    %497 = vmatpush1.msra.mxu0 0.0
    %498 = vmatprep.subr.mxu0 0.0
    %499 = vmatpush1.msra.mxu0 0.0
    %500 = vmatprep.subr.mxu0 0.0
    %501 = vmatpush1.msra.mxu0 0.0
    %502 = vmatprep.mubr.f32.mxu0 0.0
    %503 = vmatmul.mubr.f32.gmra.mrb[0].mxu0 %v436
    %v504 = vpop.f32.mrb[0].mxu0
    %v505 = vadd.f32 0.0, %v504
    %v506 = vpop.f32.mrb[0].mxu0
    %507 = vdwg.mxu0
    %v508 = vadd.f32 %v102, %v505
    %v509 = vtanh.pop %v508
    %v510 = vxor.u32 %v508, 2147483648
    %v511 = vmul.f32 %v510, 1.442695
    %v512 = vpow.pop %v511
    %v513 = vadd.f32 %v512, 1.0
    %v514 = vrcp.pop %v513
    %v515 = vmul.f32 1.0, %v514
    %v516 = vsel %vm64, %v509, %v515
    %v517 = vmul.f32 %v516, %v426
    %519 = vrot.lane.b32.xlu0 %v516, 64
    %v520 = vpop.permute.xlu0 %519
    %v522 = vmul.f32 %v516, %v520
    %524 = vrot.lane.b32.xlu0 %v522, 32
    %v525 = vpop.permute.xlu0 %524
    %v527 = vadd.f32 %v517, %v525
    %v528 = vtanh.pop %v527
    %530 = vrot.lane.b32.xlu0 %v528, 64
    %v531 = vpop.permute.xlu0 %530
    %v533 = vmul.f32 %v516, %v531
    %535 = vrot.lane.b32.xlu0 %v533, 32
    %v536 = vpop.permute.xlu0 %535
    %v537 = vsel %vm131, %v536, 0
    %539 = vmatprep.subr.mxu0 0.0
    %540 = vmatpush1.msra.mxu0 %v127
    %541 = vmatprep.subr.mxu0 0.0
    %542 = vmatpush1.msra.mxu0 %v128
    %543 = vmatprep.subr.mxu0 0.0
    %544 = vmatpush1.msra.mxu0 %v129
    %545 = vmatprep.subr.mxu0 0.0
    %546 = vmatpush1.msra.mxu0 %v130
    %547 = vmatprep.subr.mxu0 0.0
    %548 = vmatpush1.msra.mxu0 0.0
    %549 = vmatprep.subr.mxu0 0.0
    %550 = vmatpush1.msra.mxu0 0.0
    %551 = vmatprep.subr.mxu0 0.0
    %552 = vmatpush1.msra.mxu0 0.0
    %553 = vmatprep.subr.mxu0 0.0
    %554 = vmatpush1.msra.mxu0 0.0
    %555 = vmatprep.subr.mxu0 0.0
    %556 = vmatpush1.msra.mxu0 0.0
    %557 = vmatprep.subr.mxu0 0.0
    %558 = vmatpush1.msra.mxu0 0.0
    %559 = vmatprep.subr.mxu0 0.0
    %560 = vmatpush1.msra.mxu0 0.0
    %561 = vmatprep.subr.mxu0 0.0
    %562 = vmatpush1.msra.mxu0 0.0
    %563 = vmatprep.subr.mxu0 0.0
    %564 = vmatpush1.msra.mxu0 0.0
    %565 = vmatprep.subr.mxu0 0.0
    %566 = vmatpush1.msra.mxu0 0.0
    %567 = vmatprep.subr.mxu0 0.0
    %568 = vmatpush1.msra.mxu0 0.0
    %569 = vmatprep.subr.mxu0 0.0
    %570 = vmatpush1.msra.mxu0 0.0
    %571 = vmatprep.subr.mxu0 0.0
    %572 = vmatpush1.msra.mxu0 0.0
    %573 = vmatprep.subr.mxu0 0.0
    %574 = vmatpush1.msra.mxu0 0.0
    %575 = vmatprep.subr.mxu0 0.0
    %576 = vmatpush1.msra.mxu0 0.0
    %577 = vmatprep.subr.mxu0 0.0
    %578 = vmatpush1.msra.mxu0 0.0
    %579 = vmatprep.subr.mxu0 0.0
    %580 = vmatpush1.msra.mxu0 0.0
    %581 = vmatprep.subr.mxu0 0.0
    %582 = vmatpush1.msra.mxu0 0.0
    %583 = vmatprep.subr.mxu0 0.0
    %584 = vmatpush1.msra.mxu0 0.0
    %585 = vmatprep.subr.mxu0 0.0
    %586 = vmatpush1.msra.mxu0 0.0
    %587 = vmatprep.subr.mxu0 0.0
    %588 = vmatpush1.msra.mxu0 0.0
    %589 = vmatprep.subr.mxu0 0.0
    %590 = vmatpush1.msra.mxu0 0.0
    %591 = vmatprep.subr.mxu0 0.0
    %592 = vmatpush1.msra.mxu0 0.0
    %593 = vmatprep.subr.mxu0 0.0
    %594 = vmatpush1.msra.mxu0 0.0
    %595 = vmatprep.subr.mxu0 0.0
    %596 = vmatpush1.msra.mxu0 0.0
    %597 = vmatprep.subr.mxu0 0.0
    %598 = vmatpush1.msra.mxu0 0.0
    %599 = vmatprep.subr.mxu0 0.0
    %600 = vmatpush1.msra.mxu0 0.0
    %601 = vmatprep.subr.mxu0 0.0
    %602 = vmatpush1.msra.mxu0 0.0
    %603 = vmatprep.mubr.f32.mxu0 0.0
    %604 = vmatmul.mubr.f32.gmra.mrb[0].mxu0 %v537
    %v605 = vpop.f32.mrb[0].mxu0
    %v606 = vadd.f32 0.0, %v605
    %v607 = vpop.f32.mrb[0].mxu0
    %608 = vdwg.mxu0
    %v609 = vadd.f32 %v108, %v606
    %v610 = vtanh.pop %v609
    %v611 = vxor.u32 %v609, 2147483648
    %v612 = vmul.f32 %v611, 1.442695
    %v613 = vpow.pop %v612
    %v614 = vadd.f32 %v613, 1.0
    %v615 = vrcp.pop %v614
    %v616 = vmul.f32 1.0, %v615
    %v617 = vsel %vm64, %v610, %v616
    %v618 = vmul.f32 %v617, %v527
    %620 = vrot.lane.b32.xlu0 %v617, 64
    %v621 = vpop.permute.xlu0 %620
    %v623 = vmul.f32 %v617, %v621
    %625 = vrot.lane.b32.xlu0 %v623, 32
    %v626 = vpop.permute.xlu0 %625
    %v628 = vadd.f32 %v618, %v626
    %v629 = vtanh.pop %v628
    %631 = vrot.lane.b32.xlu0 %v629, 64
    %v632 = vpop.permute.xlu0 %631
    %v634 = vmul.f32 %v617, %v632
    %636 = vrot.lane.b32.xlu0 %v634, 32
    %v637 = vpop.permute.xlu0 %636
    %v638 = vsel %vm131, %v637, 0
    %640 = vmatprep.subr.mxu0 0.0
    %641 = vmatpush1.msra.mxu0 %v127
    %642 = vmatprep.subr.mxu0 0.0
    %643 = vmatpush1.msra.mxu0 %v128
    %644 = vmatprep.subr.mxu0 0.0
    %645 = vmatpush1.msra.mxu0 %v129
    %646 = vmatprep.subr.mxu0 0.0
    %647 = vmatpush1.msra.mxu0 %v130
    %648 = vmatprep.subr.mxu0 0.0
    %649 = vmatpush1.msra.mxu0 0.0
    %650 = vmatprep.subr.mxu0 0.0
    %651 = vmatpush1.msra.mxu0 0.0
    %652 = vmatprep.subr.mxu0 0.0
    %653 = vmatpush1.msra.mxu0 0.0
    %654 = vmatprep.subr.mxu0 0.0
    %655 = vmatpush1.msra.mxu0 0.0
    %656 = vmatprep.subr.mxu0 0.0
    %657 = vmatpush1.msra.mxu0 0.0
    %658 = vmatprep.subr.mxu0 0.0
    %659 = vmatpush1.msra.mxu0 0.0
    %660 = vmatprep.subr.mxu0 0.0
    %661 = vmatpush1.msra.mxu0 0.0
    %662 = vmatprep.subr.mxu0 0.0
    %663 = vmatpush1.msra.mxu0 0.0
    %664 = vmatprep.subr.mxu0 0.0
    %665 = vmatpush1.msra.mxu0 0.0
    %666 = vmatprep.subr.mxu0 0.0
    %667 = vmatpush1.msra.mxu0 0.0
    %668 = vmatprep.subr.mxu0 0.0
    %669 = vmatpush1.msra.mxu0 0.0
    %670 = vmatprep.subr.mxu0 0.0
    %671 = vmatpush1.msra.mxu0 0.0
    %672 = vmatprep.subr.mxu0 0.0
    %673 = vmatpush1.msra.mxu0 0.0
    %674 = vmatprep.subr.mxu0 0.0
    %675 = vmatpush1.msra.mxu0 0.0
    %676 = vmatprep.subr.mxu0 0.0
    %677 = vmatpush1.msra.mxu0 0.0
    %678 = vmatprep.subr.mxu0 0.0
    %679 = vmatpush1.msra.mxu0 0.0
    %680 = vmatprep.subr.mxu0 0.0
    %681 = vmatpush1.msra.mxu0 0.0
    %682 = vmatprep.subr.mxu0 0.0
    %683 = vmatpush1.msra.mxu0 0.0
    %684 = vmatprep.subr.mxu0 0.0
    %685 = vmatpush1.msra.mxu0 0.0
    %686 = vmatprep.subr.mxu0 0.0
    %687 = vmatpush1.msra.mxu0 0.0
    %688 = vmatprep.subr.mxu0 0.0
    %689 = vmatpush1.msra.mxu0 0.0
    %690 = vmatprep.subr.mxu0 0.0
    %691 = vmatpush1.msra.mxu0 0.0
    %692 = vmatprep.subr.mxu0 0.0
    %693 = vmatpush1.msra.mxu0 0.0
    %694 = vmatprep.subr.mxu0 0.0
    %695 = vmatpush1.msra.mxu0 0.0
    %696 = vmatprep.subr.mxu0 0.0
    %697 = vmatpush1.msra.mxu0 0.0
    %698 = vmatprep.subr.mxu0 0.0
    %699 = vmatpush1.msra.mxu0 0.0
    %700 = vmatprep.subr.mxu0 0.0
    %701 = vmatpush1.msra.mxu0 0.0
    %702 = vmatprep.subr.mxu0 0.0
    %703 = vmatpush1.msra.mxu0 0.0
    %704 = vmatprep.mubr.f32.mxu0 0.0
    %705 = vmatmul.mubr.f32.gmra.mrb[0].mxu0 %v638
    %v706 = vpop.f32.mrb[0].mxu0
    %v707 = vadd.f32 0.0, %v706
    %v708 = vpop.f32.mrb[0].mxu0
    %709 = vdwg.mxu0
    %v710 = vadd.f32 %v114, %v707
    %v711 = vtanh.pop %v710
    %v712 = vxor.u32 %v710, 2147483648
    %v713 = vmul.f32 %v712, 1.442695
    %v714 = vpow.pop %v713
    %v715 = vadd.f32 %v714, 1.0
    %v716 = vrcp.pop %v715
    %v717 = vmul.f32 1.0, %v716
    %v718 = vsel %vm64, %v711, %v717
    %v719 = vmul.f32 %v718, %v628
    %721 = vrot.lane.b32.xlu0 %v718, 64
    %v722 = vpop.permute.xlu0 %721
    %v724 = vmul.f32 %v718, %v722
    %726 = vrot.lane.b32.xlu0 %v724, 32
    %v727 = vpop.permute.xlu0 %726
    %v729 = vadd.f32 %v719, %v727
    %v730 = vtanh.pop %v729
    %732 = vrot.lane.b32.xlu0 %v730, 64
    %v733 = vpop.permute.xlu0 %732
    %v735 = vmul.f32 %v718, %v733
    %737 = vrot.lane.b32.xlu0 %v735, 32
    %v738 = vpop.permute.xlu0 %737
    %v739 = vsel %vm131, %v738, 0
    %741 = vmatprep.subr.mxu0 0.0
    %742 = vmatpush1.msra.mxu0 %v127
    %743 = vmatprep.subr.mxu0 0.0
    %744 = vmatpush1.msra.mxu0 %v128
    %745 = vmatprep.subr.mxu0 0.0
    %746 = vmatpush1.msra.mxu0 %v129
    %747 = vmatprep.subr.mxu0 0.0
    %748 = vmatpush1.msra.mxu0 %v130
    %749 = vmatprep.subr.mxu0 0.0
    %750 = vmatpush1.msra.mxu0 0.0
    %751 = vmatprep.subr.mxu0 0.0
    %752 = vmatpush1.msra.mxu0 0.0
    %753 = vmatprep.subr.mxu0 0.0
    %754 = vmatpush1.msra.mxu0 0.0
    %755 = vmatprep.subr.mxu0 0.0
    %756 = vmatpush1.msra.mxu0 0.0
    %757 = vmatprep.subr.mxu0 0.0
    %758 = vmatpush1.msra.mxu0 0.0
    %759 = vmatprep.subr.mxu0 0.0
    %760 = vmatpush1.msra.mxu0 0.0
    %761 = vmatprep.subr.mxu0 0.0
    %762 = vmatpush1.msra.mxu0 0.0
    %763 = vmatprep.subr.mxu0 0.0
    %764 = vmatpush1.msra.mxu0 0.0
    %765 = vmatprep.subr.mxu0 0.0
    %766 = vmatpush1.msra.mxu0 0.0
    %767 = vmatprep.subr.mxu0 0.0
    %768 = vmatpush1.msra.mxu0 0.0
    %769 = vmatprep.subr.mxu0 0.0
    %770 = vmatpush1.msra.mxu0 0.0
    %771 = vmatprep.subr.mxu0 0.0
    %772 = vmatpush1.msra.mxu0 0.0
    %773 = vmatprep.subr.mxu0 0.0
    %774 = vmatpush1.msra.mxu0 0.0
    %775 = vmatprep.subr.mxu0 0.0
    %776 = vmatpush1.msra.mxu0 0.0
    %777 = vmatprep.subr.mxu0 0.0
    %778 = vmatpush1.msra.mxu0 0.0
    %779 = vmatprep.subr.mxu0 0.0
    %780 = vmatpush1.msra.mxu0 0.0
    %781 = vmatprep.subr.mxu0 0.0
    %782 = vmatpush1.msra.mxu0 0.0
    %783 = vmatprep.subr.mxu0 0.0
    %784 = vmatpush1.msra.mxu0 0.0
    %785 = vmatprep.subr.mxu0 0.0
    %786 = vmatpush1.msra.mxu0 0.0
    %787 = vmatprep.subr.mxu0 0.0
    %788 = vmatpush1.msra.mxu0 0.0
    %789 = vmatprep.subr.mxu0 0.0
    %790 = vmatpush1.msra.mxu0 0.0
    %791 = vmatprep.subr.mxu0 0.0
    %792 = vmatpush1.msra.mxu0 0.0
    %793 = vmatprep.subr.mxu0 0.0
    %794 = vmatpush1.msra.mxu0 0.0
    %795 = vmatprep.subr.mxu0 0.0
    %796 = vmatpush1.msra.mxu0 0.0
    %797 = vmatprep.subr.mxu0 0.0
    %798 = vmatpush1.msra.mxu0 0.0
    %799 = vmatprep.subr.mxu0 0.0
    %800 = vmatpush1.msra.mxu0 0.0
    %801 = vmatprep.subr.mxu0 0.0
    %802 = vmatpush1.msra.mxu0 0.0
    %803 = vmatprep.subr.mxu0 0.0
    %804 = vmatpush1.msra.mxu0 0.0
    %805 = vmatprep.mubr.f32.mxu0 0.0
    %806 = vmatmul.mubr.f32.gmra.mrb[0].mxu0 %v739
    %v807 = vpop.f32.mrb[0].mxu0
    %v808 = vadd.f32 0.0, %v807
    %v809 = vpop.f32.mrb[0].mxu0
    %810 = vdwg.mxu0
    %v811 = vadd.f32 %v120, %v808
    %v812 = vtanh.pop %v811
    %v813 = vxor.u32 %v811, 2147483648
    %v814 = vmul.f32 %v813, 1.442695
    %v815 = vpow.pop %v814
    %v816 = vadd.f32 %v815, 1.0
    %v817 = vrcp.pop %v816
    %v818 = vmul.f32 1.0, %v817
    %v819 = vsel %vm64, %v812, %v818
    %v820 = vmul.f32 %v819, %v729
    %822 = vrot.lane.b32.xlu0 %v819, 64
    %v823 = vpop.permute.xlu0 %822
    %v825 = vmul.f32 %v819, %v823
    %827 = vrot.lane.b32.xlu0 %v825, 32
    %v828 = vpop.permute.xlu0 %827
    %v830 = vadd.f32 %v820, %v828
    %v831 = vtanh.pop %v830
    %833 = vrot.lane.b32.xlu0 %v831, 64
    %v834 = vpop.permute.xlu0 %833
    %v836 = vmul.f32 %v819, %v834
    %838 = vrot.lane.b32.xlu0 %v836, 32
    %v839 = vpop.permute.xlu0 %838
    %v840 = vsel %vm131, %v839, 0
    %842 = vmatprep.subr.mxu0 0.0
    %843 = vmatpush1.msra.mxu0 %v127
    %844 = vmatprep.subr.mxu0 0.0
    %845 = vmatpush1.msra.mxu0 %v128
    %846 = vmatprep.subr.mxu0 0.0
    %847 = vmatpush1.msra.mxu0 %v129
    %848 = vmatprep.subr.mxu0 0.0
    %849 = vmatpush1.msra.mxu0 %v130
    %850 = vmatprep.subr.mxu0 0.0
    %851 = vmatpush1.msra.mxu0 0.0
    %852 = vmatprep.subr.mxu0 0.0
    %853 = vmatpush1.msra.mxu0 0.0
    %854 = vmatprep.subr.mxu0 0.0
    %855 = vmatpush1.msra.mxu0 0.0
    %856 = vmatprep.subr.mxu0 0.0
    %857 = vmatpush1.msra.mxu0 0.0
    %858 = vmatprep.subr.mxu0 0.0
    %859 = vmatpush1.msra.mxu0 0.0
    %860 = vmatprep.subr.mxu0 0.0
    %861 = vmatpush1.msra.mxu0 0.0
    %862 = vmatprep.subr.mxu0 0.0
    %863 = vmatpush1.msra.mxu0 0.0
    %864 = vmatprep.subr.mxu0 0.0
    %865 = vmatpush1.msra.mxu0 0.0
    %866 = vmatprep.subr.mxu0 0.0
    %867 = vmatpush1.msra.mxu0 0.0
    %868 = vmatprep.subr.mxu0 0.0
    %869 = vmatpush1.msra.mxu0 0.0
    %870 = vmatprep.subr.mxu0 0.0
    %871 = vmatpush1.msra.mxu0 0.0
    %872 = vmatprep.subr.mxu0 0.0
    %873 = vmatpush1.msra.mxu0 0.0
    %874 = vmatprep.subr.mxu0 0.0
    %875 = vmatpush1.msra.mxu0 0.0
    %876 = vmatprep.subr.mxu0 0.0
    %877 = vmatpush1.msra.mxu0 0.0
    %878 = vmatprep.subr.mxu0 0.0
    %879 = vmatpush1.msra.mxu0 0.0
    %880 = vmatprep.subr.mxu0 0.0
    %881 = vmatpush1.msra.mxu0 0.0
    %882 = vmatprep.subr.mxu0 0.0
    %883 = vmatpush1.msra.mxu0 0.0
    %884 = vmatprep.subr.mxu0 0.0
    %885 = vmatpush1.msra.mxu0 0.0
    %886 = vmatprep.subr.mxu0 0.0
    %887 = vmatpush1.msra.mxu0 0.0
    %888 = vmatprep.subr.mxu0 0.0
    %889 = vmatpush1.msra.mxu0 0.0
    %890 = vmatprep.subr.mxu0 0.0
    %891 = vmatpush1.msra.mxu0 0.0
    %892 = vmatprep.subr.mxu0 0.0
    %893 = vmatpush1.msra.mxu0 0.0
    %894 = vmatprep.subr.mxu0 0.0
    %895 = vmatpush1.msra.mxu0 0.0
    %896 = vmatprep.subr.mxu0 0.0
    %897 = vmatpush1.msra.mxu0 0.0
    %898 = vmatprep.subr.mxu0 0.0
    %899 = vmatpush1.msra.mxu0 0.0
    %900 = vmatprep.subr.mxu0 0.0
    %901 = vmatpush1.msra.mxu0 0.0
    %902 = vmatprep.subr.mxu0 0.0
    %903 = vmatpush1.msra.mxu0 0.0
    %904 = vmatprep.subr.mxu0 0.0
    %905 = vmatpush1.msra.mxu0 0.0
    %906 = vmatprep.mubr.f32.mxu0 0.0
    %907 = vmatmul.mubr.f32.gmra.mrb[0].mxu0 %v840
    %v908 = vpop.f32.mrb[0].mxu0
    %v909 = vadd.f32 0.0, %v908
    %v910 = vpop.f32.mrb[0].mxu0
    %911 = vdwg.mxu0
    %v912 = vadd.f32 %v126, %v909
    %v913 = vtanh.pop %v912
    %v914 = vxor.u32 %v912, 2147483648
    %v915 = vmul.f32 %v914, 1.442695
    %v916 = vpow.pop %v915
    %v917 = vadd.f32 %v916, 1.0
    %v918 = vrcp.pop %v917
    %v919 = vmul.f32 1.0, %v918
    %v920 = vsel %vm64, %v913, %v919
    %v921 = vmul.f32 %v920, %v830
    %923 = vrot.lane.b32.xlu0 %v920, 64
    %v924 = vpop.permute.xlu0 %923
    %v926 = vmul.f32 %v920, %v924
    %928 = vrot.lane.b32.xlu0 %v926, 32
    %v929 = vpop.permute.xlu0 %928
    %v931 = vadd.f32 %v921, %v929
    %v932 = vtanh.pop %v931
    %934 = vrot.lane.b32.xlu0 %v932, 64
    %v935 = vpop.permute.xlu0 %934
    %v937 = vmul.f32 %v920, %v935
    %v938 = vld [vmem:[#allocation5] sm:$0xff]
    %v939 = vld [vmem:[#allocation5 + $0x8] sm:$0xff]
    %v940 = vld [vmem:[#allocation5 + $0x10] sm:$0xff]
    %v941 = vld [vmem:[#allocation5 + $0x18] sm:$0xff]
    %v942 = vld [vmem:[%s4 + $0x1] sm:$0x1]
    %v943 = vlaneseq
    %v944 = vshrl.u32 %v943, 7
    %v945 = vsub.s32 0, %v944
    %v946 = vrot.slane %v942, %v945
    %948 = vrot.lane.b32.xlu0 %v937, 32
    %v949 = vpop.permute.xlu0 %948
    %v950 = vsel %vm131, %v949, 0
    %952 = vmatprep.subr.mxu0 0.0
    %953 = vmatpush1.msra.mxu0 %v938
    %954 = vmatprep.subr.mxu0 0.0
    %955 = vmatpush1.msra.mxu0 %v939
    %956 = vmatprep.subr.mxu0 0.0
    %957 = vmatpush1.msra.mxu0 %v940
    %958 = vmatprep.subr.mxu0 0.0
    %959 = vmatpush1.msra.mxu0 %v941
    %960 = vmatprep.subr.mxu0 0.0
    %961 = vmatpush1.msra.mxu0 0.0
    %962 = vmatprep.subr.mxu0 0.0
    %963 = vmatpush1.msra.mxu0 0.0
    %964 = vmatprep.subr.mxu0 0.0
    %965 = vmatpush1.msra.mxu0 0.0
    %966 = vmatprep.subr.mxu0 0.0
    %967 = vmatpush1.msra.mxu0 0.0
    %968 = vmatprep.subr.mxu0 0.0
    %969 = vmatpush1.msra.mxu0 0.0
    %970 = vmatprep.subr.mxu0 0.0
    %971 = vmatpush1.msra.mxu0 0.0
    %972 = vmatprep.subr.mxu0 0.0
    %973 = vmatpush1.msra.mxu0 0.0
    %974 = vmatprep.subr.mxu0 0.0
    %975 = vmatpush1.msra.mxu0 0.0
    %976 = vmatprep.subr.mxu0 0.0
    %977 = vmatpush1.msra.mxu0 0.0
    %978 = vmatprep.subr.mxu0 0.0
    %979 = vmatpush1.msra.mxu0 0.0
    %980 = vmatprep.subr.mxu0 0.0
    %981 = vmatpush1.msra.mxu0 0.0
    %982 = vmatprep.subr.mxu0 0.0
    %983 = vmatpush1.msra.mxu0 0.0
    %984 = vmatprep.subr.mxu0 0.0
    %985 = vmatpush1.msra.mxu0 0.0
    %986 = vmatprep.subr.mxu0 0.0
    %987 = vmatpush1.msra.mxu0 0.0
    %988 = vmatprep.subr.mxu0 0.0
    %989 = vmatpush1.msra.mxu0 0.0
    %990 = vmatprep.subr.mxu0 0.0
    %991 = vmatpush1.msra.mxu0 0.0
    %992 = vmatprep.subr.mxu0 0.0
    %993 = vmatpush1.msra.mxu0 0.0
    %994 = vmatprep.subr.mxu0 0.0
    %995 = vmatpush1.msra.mxu0 0.0
    %996 = vmatprep.subr.mxu0 0.0
    %997 = vmatpush1.msra.mxu0 0.0
    %998 = vmatprep.subr.mxu0 0.0
    %999 = vmatpush1.msra.mxu0 0.0
    %1000 = vmatprep.subr.mxu0 0.0
    %1001 = vmatpush1.msra.mxu0 0.0
    %1002 = vmatprep.subr.mxu0 0.0
    %1003 = vmatpush1.msra.mxu0 0.0
    %1004 = vmatprep.subr.mxu0 0.0
    %1005 = vmatpush1.msra.mxu0 0.0
    %1006 = vmatprep.subr.mxu0 0.0
    %1007 = vmatpush1.msra.mxu0 0.0
    %1008 = vmatprep.subr.mxu0 0.0
    %1009 = vmatpush1.msra.mxu0 0.0
    %1010 = vmatprep.subr.mxu0 0.0
    %1011 = vmatpush1.msra.mxu0 0.0
    %1012 = vmatprep.subr.mxu0 0.0
    %1013 = vmatpush1.msra.mxu0 0.0
    %1014 = vmatprep.subr.mxu0 0.0
    %1015 = vmatpush1.msra.mxu0 0.0
    %1016 = vmatprep.mubr.f32.mxu0 0.0
    %1017 = vmatmul.mubr.f32.gmra.mrb[0].mxu0 %v234
    %v1018 = vpop.f32.mrb[0].mxu0
    %v1019 = vadd.f32 %v946, %v1018
    %v1020 = vpop.f32.mrb[0].mxu0
    %1021 = vmatprep.mubr.f32.mxu0 0.0
    %1022 = vmatmul.mubr.f32.gmra.mrb[0].mxu0 %v335
    %v1023 = vpop.f32.mrb[0].mxu0
    %v1024 = vadd.f32 %v946, %v1023
    %v1025 = vpop.f32.mrb[0].mxu0
    %1026 = vmatprep.mubr.f32.mxu0 0.0
    %1027 = vmatmul.mubr.f32.gmra.mrb[0].mxu0 %v436
    %v1028 = vpop.f32.mrb[0].mxu0
    %v1029 = vadd.f32 %v946, %v1028
    %v1030 = vpop.f32.mrb[0].mxu0
    %1031 = vmatprep.mubr.f32.mxu0 0.0
    %1032 = vmatmul.mubr.f32.gmra.mrb[0].mxu0 %v537
    %v1033 = vpop.f32.mrb[0].mxu0
    %v1034 = vadd.f32 %v946, %v1033
    %v1035 = vpop.f32.mrb[0].mxu0
    %1036 = vmatprep.mubr.f32.mxu0 0.0
    %1037 = vmatmul.mubr.f32.gmra.mrb[0].mxu0 %v638
    %v1038 = vpop.f32.mrb[0].mxu0
    %v1039 = vadd.f32 %v946, %v1038
    %v1040 = vpop.f32.mrb[0].mxu0
    %1041 = vmatprep.mubr.f32.mxu0 0.0
    %1042 = vmatmul.mubr.f32.gmra.mrb[0].mxu0 %v739
    %v1043 = vpop.f32.mrb[0].mxu0
    %v1044 = vadd.f32 %v946, %v1043
    %v1045 = vpop.f32.mrb[0].mxu0
    %1046 = vmatprep.mubr.f32.mxu0 0.0
    %1047 = vmatmul.mubr.f32.gmra.mrb[0].mxu0 %v840
    %v1048 = vpop.f32.mrb[0].mxu0
    %v1049 = vadd.f32 %v946, %v1048
    %v1050 = vpop.f32.mrb[0].mxu0
    %1051 = vmatprep.mubr.f32.mxu0 0.0
    %1052 = vmatmul.mubr.f32.gmra.mrb[0].mxu0 %v950
    %v1053 = vpop.f32.mrb[0].mxu0
    %v1054 = vadd.f32 %v946, %v1053
    %v1055 = vpop.f32.mrb[0].mxu0
    %1056 = vdwg.mxu0
    %s1057 = scalar_lea.vmem [#allocation7], 32
    %v1058 = vld [vmem:[%s1057] sm:$0xff]
    %v1059 = vld [vmem:[%s1057 + $0x8] sm:$0xff]
    %v1060 = vld [vmem:[%s1057 + $0x10] sm:$0xff]
    %v1061 = vld [vmem:[%s1057 + $0x18] sm:$0xff]
    %1062 = vmatprep.subr.mxu0 0.0
    %1063 = vmatpush1.msra.mxu0 %v1058
    %1064 = vmatprep.subr.mxu0 0.0
    %1065 = vmatpush1.msra.mxu0 %v1059
    %1066 = vmatprep.subr.mxu0 0.0
    %1067 = vmatpush1.msra.mxu0 %v1060
    %1068 = vmatprep.subr.mxu0 0.0
    %1069 = vmatpush1.msra.mxu0 %v1061
    %1070 = vmatprep.subr.mxu0 0.0
    %1071 = vmatpush1.msra.mxu0 0.0
    %1072 = vmatprep.subr.mxu0 0.0
    %1073 = vmatpush1.msra.mxu0 0.0
    %1074 = vmatprep.subr.mxu0 0.0
    %1075 = vmatpush1.msra.mxu0 0.0
    %1076 = vmatprep.subr.mxu0 0.0
    %1077 = vmatpush1.msra.mxu0 0.0
    %1078 = vmatprep.subr.mxu0 0.0
    %1079 = vmatpush1.msra.mxu0 0.0
    %1080 = vmatprep.subr.mxu0 0.0
    %1081 = vmatpush1.msra.mxu0 0.0
    %1082 = vmatprep.subr.mxu0 0.0
    %1083 = vmatpush1.msra.mxu0 0.0
    %1084 = vmatprep.subr.mxu0 0.0
    %1085 = vmatpush1.msra.mxu0 0.0
    %1086 = vmatprep.subr.mxu0 0.0
    %1087 = vmatpush1.msra.mxu0 0.0
    %1088 = vmatprep.subr.mxu0 0.0
    %1089 = vmatpush1.msra.mxu0 0.0
    %1090 = vmatprep.subr.mxu0 0.0
    %1091 = vmatpush1.msra.mxu0 0.0
    %1092 = vmatprep.subr.mxu0 0.0
    %1093 = vmatpush1.msra.mxu0 0.0
    %1094 = vmatprep.subr.mxu0 0.0
    %1095 = vmatpush1.msra.mxu0 0.0
    %1096 = vmatprep.subr.mxu0 0.0
    %1097 = vmatpush1.msra.mxu0 0.0
    %1098 = vmatprep.subr.mxu0 0.0
    %1099 = vmatpush1.msra.mxu0 0.0
    %1100 = vmatprep.subr.mxu0 0.0
    %1101 = vmatpush1.msra.mxu0 0.0
    %1102 = vmatprep.subr.mxu0 0.0
    %1103 = vmatpush1.msra.mxu0 0.0
    %1104 = vmatprep.subr.mxu0 0.0
    %1105 = vmatpush1.msra.mxu0 0.0
    %1106 = vmatprep.subr.mxu0 0.0
    %1107 = vmatpush1.msra.mxu0 0.0
    %1108 = vmatprep.subr.mxu0 0.0
    %1109 = vmatpush1.msra.mxu0 0.0
    %1110 = vmatprep.subr.mxu0 0.0
    %1111 = vmatpush1.msra.mxu0 0.0
    %1112 = vmatprep.subr.mxu0 0.0
    %1113 = vmatpush1.msra.mxu0 0.0
    %1114 = vmatprep.subr.mxu0 0.0
    %1115 = vmatpush1.msra.mxu0 0.0
    %1116 = vmatprep.subr.mxu0 0.0
    %1117 = vmatpush1.msra.mxu0 0.0
    %1118 = vmatprep.subr.mxu0 0.0
    %1119 = vmatpush1.msra.mxu0 0.0
    %1120 = vmatprep.subr.mxu0 0.0
    %1121 = vmatpush1.msra.mxu0 0.0
    %1122 = vmatprep.subr.mxu0 0.0
    %1123 = vmatpush1.msra.mxu0 0.0
    %1124 = vmatprep.subr.mxu0 0.0
    %1125 = vmatpush1.msra.mxu0 0.0
    %1126 = vmatprep.mubr.f32.mxu0 0.0
    %1127 = vmatmul.mubr.f32.gmra.mrb[0].mxu0 %v133
    %v1128 = vpop.f32.mrb[0].mxu0
    %v1129 = vadd.f32 0.0, %v1128
    %v1130 = vpop.f32.mrb[0].mxu0
    %1131 = vdwg.mxu0
    %v1132 = vadd.f32 %v1019, %v1129
    %v1133 = vtanh.pop %v1132
    %v1134 = vxor.u32 %v1132, 2147483648
    %v1135 = vmul.f32 %v1134, 1.442695
    %v1136 = vpow.pop %v1135
    %v1137 = vadd.f32 %v1136, 1.0
    %v1138 = vrcp.pop %v1137
    %v1139 = vmul.f32 1.0, %v1138
    %v1140 = vsel %vm64, %v1133, %v1139
    %v1141 = vmul.f32 %v1140, 0.0
    %1143 = vrot.lane.b32.xlu0 %v1140, 64
    %v1144 = vpop.permute.xlu0 %1143
    %v1146 = vmul.f32 %v1140, %v1144
    %1148 = vrot.lane.b32.xlu0 %v1146, 32
    %v1149 = vpop.permute.xlu0 %1148
    %v1151 = vadd.f32 %v1141, %v1149
    %v1152 = vtanh.pop %v1151
    %1154 = vrot.lane.b32.xlu0 %v1152, 64
    %v1155 = vpop.permute.xlu0 %1154
    %v1157 = vmul.f32 %v1140, %v1155
    %1159 = vrot.lane.b32.xlu0 %v1157, 32
    %v1160 = vpop.permute.xlu0 %1159
    %v1161 = vsel %vm131, %v1160, 0
    %1163 = vmatprep.subr.mxu0 0.0
    %1164 = vmatpush1.msra.mxu0 %v1058
    %1165 = vmatprep.subr.mxu0 0.0
    %1166 = vmatpush1.msra.mxu0 %v1059
    %1167 = vmatprep.subr.mxu0 0.0
    %1168 = vmatpush1.msra.mxu0 %v1060
    %1169 = vmatprep.subr.mxu0 0.0
    %1170 = vmatpush1.msra.mxu0 %v1061
    %1171 = vmatprep.subr.mxu0 0.0
    %1172 = vmatpush1.msra.mxu0 0.0
    %1173 = vmatprep.subr.mxu0 0.0
    %1174 = vmatpush1.msra.mxu0 0.0
    %1175 = vmatprep.subr.mxu0 0.0
    %1176 = vmatpush1.msra.mxu0 0.0
    %1177 = vmatprep.subr.mxu0 0.0
    %1178 = vmatpush1.msra.mxu0 0.0
    %1179 = vmatprep.subr.mxu0 0.0
    %1180 = vmatpush1.msra.mxu0 0.0
    %1181 = vmatprep.subr.mxu0 0.0
    %1182 = vmatpush1.msra.mxu0 0.0
    %1183 = vmatprep.subr.mxu0 0.0
    %1184 = vmatpush1.msra.mxu0 0.0
    %1185 = vmatprep.subr.mxu0 0.0
    %1186 = vmatpush1.msra.mxu0 0.0
    %1187 = vmatprep.subr.mxu0 0.0
    %1188 = vmatpush1.msra.mxu0 0.0
    %1189 = vmatprep.subr.mxu0 0.0
    %1190 = vmatpush1.msra.mxu0 0.0
    %1191 = vmatprep.subr.mxu0 0.0
    %1192 = vmatpush1.msra.mxu0 0.0
    %1193 = vmatprep.subr.mxu0 0.0
    %1194 = vmatpush1.msra.mxu0 0.0
    %1195 = vmatprep.subr.mxu0 0.0
    %1196 = vmatpush1.msra.mxu0 0.0
    %1197 = vmatprep.subr.mxu0 0.0
    %1198 = vmatpush1.msra.mxu0 0.0
    %1199 = vmatprep.subr.mxu0 0.0
    %1200 = vmatpush1.msra.mxu0 0.0
    %1201 = vmatprep.subr.mxu0 0.0
    %1202 = vmatpush1.msra.mxu0 0.0
    %1203 = vmatprep.subr.mxu0 0.0
    %1204 = vmatpush1.msra.mxu0 0.0
    %1205 = vmatprep.subr.mxu0 0.0
    %1206 = vmatpush1.msra.mxu0 0.0
    %1207 = vmatprep.subr.mxu0 0.0
    %1208 = vmatpush1.msra.mxu0 0.0
    %1209 = vmatprep.subr.mxu0 0.0
    %1210 = vmatpush1.msra.mxu0 0.0
    %1211 = vmatprep.subr.mxu0 0.0
    %1212 = vmatpush1.msra.mxu0 0.0
    %1213 = vmatprep.subr.mxu0 0.0
    %1214 = vmatpush1.msra.mxu0 0.0
    %1215 = vmatprep.subr.mxu0 0.0
    %1216 = vmatpush1.msra.mxu0 0.0
    %1217 = vmatprep.subr.mxu0 0.0
    %1218 = vmatpush1.msra.mxu0 0.0
    %1219 = vmatprep.subr.mxu0 0.0
    %1220 = vmatpush1.msra.mxu0 0.0
    %1221 = vmatprep.subr.mxu0 0.0
    %1222 = vmatpush1.msra.mxu0 0.0
    %1223 = vmatprep.subr.mxu0 0.0
    %1224 = vmatpush1.msra.mxu0 0.0
    %1225 = vmatprep.subr.mxu0 0.0
    %1226 = vmatpush1.msra.mxu0 0.0
    %1227 = vmatprep.mubr.f32.mxu0 0.0
    %1228 = vmatmul.mubr.f32.gmra.mrb[0].mxu0 %v1161
    %v1229 = vpop.f32.mrb[0].mxu0
    %v1230 = vadd.f32 0.0, %v1229
    %v1231 = vpop.f32.mrb[0].mxu0
    %1232 = vdwg.mxu0
    %v1233 = vadd.f32 %v1024, %v1230
    %v1234 = vtanh.pop %v1233
    %v1235 = vxor.u32 %v1233, 2147483648
    %v1236 = vmul.f32 %v1235, 1.442695
    %v1237 = vpow.pop %v1236
    %v1238 = vadd.f32 %v1237, 1.0
    %v1239 = vrcp.pop %v1238
    %v1240 = vmul.f32 1.0, %v1239
    %v1241 = vsel %vm64, %v1234, %v1240
    %v1242 = vmul.f32 %v1241, %v1151
    %1244 = vrot.lane.b32.xlu0 %v1241, 64
    %v1245 = vpop.permute.xlu0 %1244
    %v1247 = vmul.f32 %v1241, %v1245
    %1249 = vrot.lane.b32.xlu0 %v1247, 32
    %v1250 = vpop.permute.xlu0 %1249
    %v1252 = vadd.f32 %v1242, %v1250
    %v1253 = vtanh.pop %v1252
    %1255 = vrot.lane.b32.xlu0 %v1253, 64
    %v1256 = vpop.permute.xlu0 %1255
    %v1258 = vmul.f32 %v1241, %v1256
    %1260 = vrot.lane.b32.xlu0 %v1258, 32
    %v1261 = vpop.permute.xlu0 %1260
    %v1262 = vsel %vm131, %v1261, 0
    %1264 = vmatprep.subr.mxu0 0.0
    %1265 = vmatpush1.msra.mxu0 %v1058
    %1266 = vmatprep.subr.mxu0 0.0
    %1267 = vmatpush1.msra.mxu0 %v1059
    %1268 = vmatprep.subr.mxu0 0.0
    %1269 = vmatpush1.msra.mxu0 %v1060
    %1270 = vmatprep.subr.mxu0 0.0
    %1271 = vmatpush1.msra.mxu0 %v1061
    %1272 = vmatprep.subr.mxu0 0.0
    %1273 = vmatpush1.msra.mxu0 0.0
    %1274 = vmatprep.subr.mxu0 0.0
    %1275 = vmatpush1.msra.mxu0 0.0
    %1276 = vmatprep.subr.mxu0 0.0
    %1277 = vmatpush1.msra.mxu0 0.0
    %1278 = vmatprep.subr.mxu0 0.0
    %1279 = vmatpush1.msra.mxu0 0.0
    %1280 = vmatprep.subr.mxu0 0.0
    %1281 = vmatpush1.msra.mxu0 0.0
    %1282 = vmatprep.subr.mxu0 0.0
    %1283 = vmatpush1.msra.mxu0 0.0
    %1284 = vmatprep.subr.mxu0 0.0
    %1285 = vmatpush1.msra.mxu0 0.0
    %1286 = vmatprep.subr.mxu0 0.0
    %1287 = vmatpush1.msra.mxu0 0.0
    %1288 = vmatprep.subr.mxu0 0.0
    %1289 = vmatpush1.msra.mxu0 0.0
    %1290 = vmatprep.subr.mxu0 0.0
    %1291 = vmatpush1.msra.mxu0 0.0
    %1292 = vmatprep.subr.mxu0 0.0
    %1293 = vmatpush1.msra.mxu0 0.0
    %1294 = vmatprep.subr.mxu0 0.0
    %1295 = vmatpush1.msra.mxu0 0.0
    %1296 = vmatprep.subr.mxu0 0.0
    %1297 = vmatpush1.msra.mxu0 0.0
    %1298 = vmatprep.subr.mxu0 0.0
    %1299 = vmatpush1.msra.mxu0 0.0
    %1300 = vmatprep.subr.mxu0 0.0
    %1301 = vmatpush1.msra.mxu0 0.0
    %1302 = vmatprep.subr.mxu0 0.0
    %1303 = vmatpush1.msra.mxu0 0.0
    %1304 = vmatprep.subr.mxu0 0.0
    %1305 = vmatpush1.msra.mxu0 0.0
    %1306 = vmatprep.subr.mxu0 0.0
    %1307 = vmatpush1.msra.mxu0 0.0
    %1308 = vmatprep.subr.mxu0 0.0
    %1309 = vmatpush1.msra.mxu0 0.0
    %1310 = vmatprep.subr.mxu0 0.0
    %1311 = vmatpush1.msra.mxu0 0.0
    %1312 = vmatprep.subr.mxu0 0.0
    %1313 = vmatpush1.msra.mxu0 0.0
    %1314 = vmatprep.subr.mxu0 0.0
    %1315 = vmatpush1.msra.mxu0 0.0
    %1316 = vmatprep.subr.mxu0 0.0
    %1317 = vmatpush1.msra.mxu0 0.0
    %1318 = vmatprep.subr.mxu0 0.0
    %1319 = vmatpush1.msra.mxu0 0.0
    %1320 = vmatprep.subr.mxu0 0.0
    %1321 = vmatpush1.msra.mxu0 0.0
    %1322 = vmatprep.subr.mxu0 0.0
    %1323 = vmatpush1.msra.mxu0 0.0
    %1324 = vmatprep.subr.mxu0 0.0
    %1325 = vmatpush1.msra.mxu0 0.0
    %1326 = vmatprep.subr.mxu0 0.0
    %1327 = vmatpush1.msra.mxu0 0.0
    %1328 = vmatprep.mubr.f32.mxu0 0.0
    %1329 = vmatmul.mubr.f32.gmra.mrb[0].mxu0 %v1262
    %v1330 = vpop.f32.mrb[0].mxu0
    %v1331 = vadd.f32 0.0, %v1330
    %v1332 = vpop.f32.mrb[0].mxu0
    %1333 = vdwg.mxu0
    %v1334 = vadd.f32 %v1029, %v1331
    %v1335 = vtanh.pop %v1334
    %v1336 = vxor.u32 %v1334, 2147483648
    %v1337 = vmul.f32 %v1336, 1.442695
    %v1338 = vpow.pop %v1337
    %v1339 = vadd.f32 %v1338, 1.0
    %v1340 = vrcp.pop %v1339
    %v1341 = vmul.f32 1.0, %v1340
    %v1342 = vsel %vm64, %v1335, %v1341
    %v1343 = vmul.f32 %v1342, %v1252
    %1345 = vrot.lane.b32.xlu0 %v1342, 64
    %v1346 = vpop.permute.xlu0 %1345
    %v1348 = vmul.f32 %v1342, %v1346
    %1350 = vrot.lane.b32.xlu0 %v1348, 32
    %v1351 = vpop.permute.xlu0 %1350
    %v1353 = vadd.f32 %v1343, %v1351
    %v1354 = vtanh.pop %v1353
    %1356 = vrot.lane.b32.xlu0 %v1354, 64
    %v1357 = vpop.permute.xlu0 %1356
    %v1359 = vmul.f32 %v1342, %v1357
    %1361 = vrot.lane.b32.xlu0 %v1359, 32
    %v1362 = vpop.permute.xlu0 %1361
    %v1363 = vsel %vm131, %v1362, 0
    %1365 = vmatprep.subr.mxu0 0.0
    %1366 = vmatpush1.msra.mxu0 %v1058
    %1367 = vmatprep.subr.mxu0 0.0
    %1368 = vmatpush1.msra.mxu0 %v1059
    %1369 = vmatprep.subr.mxu0 0.0
    %1370 = vmatpush1.msra.mxu0 %v1060
    %1371 = vmatprep.subr.mxu0 0.0
    %1372 = vmatpush1.msra.mxu0 %v1061
    %1373 = vmatprep.subr.mxu0 0.0
    %1374 = vmatpush1.msra.mxu0 0.0
    %1375 = vmatprep.subr.mxu0 0.0
    %1376 = vmatpush1.msra.mxu0 0.0
    %1377 = vmatprep.subr.mxu0 0.0
    %1378 = vmatpush1.msra.mxu0 0.0
    %1379 = vmatprep.subr.mxu0 0.0
    %1380 = vmatpush1.msra.mxu0 0.0
    %1381 = vmatprep.subr.mxu0 0.0
    %1382 = vmatpush1.msra.mxu0 0.0
    %1383 = vmatprep.subr.mxu0 0.0
    %1384 = vmatpush1.msra.mxu0 0.0
    %1385 = vmatprep.subr.mxu0 0.0
    %1386 = vmatpush1.msra.mxu0 0.0
    %1387 = vmatprep.subr.mxu0 0.0
    %1388 = vmatpush1.msra.mxu0 0.0
    %1389 = vmatprep.subr.mxu0 0.0
    %1390 = vmatpush1.msra.mxu0 0.0
    %1391 = vmatprep.subr.mxu0 0.0
    %1392 = vmatpush1.msra.mxu0 0.0
    %1393 = vmatprep.subr.mxu0 0.0
    %1394 = vmatpush1.msra.mxu0 0.0
    %1395 = vmatprep.subr.mxu0 0.0
    %1396 = vmatpush1.msra.mxu0 0.0
    %1397 = vmatprep.subr.mxu0 0.0
    %1398 = vmatpush1.msra.mxu0 0.0
    %1399 = vmatprep.subr.mxu0 0.0
    %1400 = vmatpush1.msra.mxu0 0.0
    %1401 = vmatprep.subr.mxu0 0.0
    %1402 = vmatpush1.msra.mxu0 0.0
    %1403 = vmatprep.subr.mxu0 0.0
    %1404 = vmatpush1.msra.mxu0 0.0
    %1405 = vmatprep.subr.mxu0 0.0
    %1406 = vmatpush1.msra.mxu0 0.0
    %1407 = vmatprep.subr.mxu0 0.0
    %1408 = vmatpush1.msra.mxu0 0.0
    %1409 = vmatprep.subr.mxu0 0.0
    %1410 = vmatpush1.msra.mxu0 0.0
    %1411 = vmatprep.subr.mxu0 0.0
    %1412 = vmatpush1.msra.mxu0 0.0
    %1413 = vmatprep.subr.mxu0 0.0
    %1414 = vmatpush1.msra.mxu0 0.0
    %1415 = vmatprep.subr.mxu0 0.0
    %1416 = vmatpush1.msra.mxu0 0.0
    %1417 = vmatprep.subr.mxu0 0.0
    %1418 = vmatpush1.msra.mxu0 0.0
    %1419 = vmatprep.subr.mxu0 0.0
    %1420 = vmatpush1.msra.mxu0 0.0
    %1421 = vmatprep.subr.mxu0 0.0
    %1422 = vmatpush1.msra.mxu0 0.0
    %1423 = vmatprep.subr.mxu0 0.0
    %1424 = vmatpush1.msra.mxu0 0.0
    %1425 = vmatprep.subr.mxu0 0.0
    %1426 = vmatpush1.msra.mxu0 0.0
    %1427 = vmatprep.subr.mxu0 0.0
    %1428 = vmatpush1.msra.mxu0 0.0
    %1429 = vmatprep.mubr.f32.mxu0 0.0
    %1430 = vmatmul.mubr.f32.gmra.mrb[0].mxu0 %v1363
    %v1431 = vpop.f32.mrb[0].mxu0
    %v1432 = vadd.f32 0.0, %v1431
    %v1433 = vpop.f32.mrb[0].mxu0
    %1434 = vdwg.mxu0
    %v1435 = vadd.f32 %v1034, %v1432
    %v1436 = vtanh.pop %v1435
    %v1437 = vxor.u32 %v1435, 2147483648
    %v1438 = vmul.f32 %v1437, 1.442695
    %v1439 = vpow.pop %v1438
    %v1440 = vadd.f32 %v1439, 1.0
    %v1441 = vrcp.pop %v1440
    %v1442 = vmul.f32 1.0, %v1441
    %v1443 = vsel %vm64, %v1436, %v1442
    %v1444 = vmul.f32 %v1443, %v1353
    %1446 = vrot.lane.b32.xlu0 %v1443, 64
    %v1447 = vpop.permute.xlu0 %1446
    %v1449 = vmul.f32 %v1443, %v1447
    %1451 = vrot.lane.b32.xlu0 %v1449, 32
    %v1452 = vpop.permute.xlu0 %1451
    %v1454 = vadd.f32 %v1444, %v1452
    %v1455 = vtanh.pop %v1454
    %1457 = vrot.lane.b32.xlu0 %v1455, 64
    %v1458 = vpop.permute.xlu0 %1457
    %v1460 = vmul.f32 %v1443, %v1458
    %1462 = vrot.lane.b32.xlu0 %v1460, 32
    %v1463 = vpop.permute.xlu0 %1462
    %v1464 = vsel %vm131, %v1463, 0
    %1466 = vmatprep.subr.mxu0 0.0
    %1467 = vmatpush1.msra.mxu0 %v1058
    %1468 = vmatprep.subr.mxu0 0.0
    %1469 = vmatpush1.msra.mxu0 %v1059
    %1470 = vmatprep.subr.mxu0 0.0
    %1471 = vmatpush1.msra.mxu0 %v1060
    %1472 = vmatprep.subr.mxu0 0.0
    %1473 = vmatpush1.msra.mxu0 %v1061
    %1474 = vmatprep.subr.mxu0 0.0
    %1475 = vmatpush1.msra.mxu0 0.0
    %1476 = vmatprep.subr.mxu0 0.0
    %1477 = vmatpush1.msra.mxu0 0.0
    %1478 = vmatprep.subr.mxu0 0.0
    %1479 = vmatpush1.msra.mxu0 0.0
    %1480 = vmatprep.subr.mxu0 0.0
    %1481 = vmatpush1.msra.mxu0 0.0
    %1482 = vmatprep.subr.mxu0 0.0
    %1483 = vmatpush1.msra.mxu0 0.0
    %1484 = vmatprep.subr.mxu0 0.0
    %1485 = vmatpush1.msra.mxu0 0.0
    %1486 = vmatprep.subr.mxu0 0.0
    %1487 = vmatpush1.msra.mxu0 0.0
    %1488 = vmatprep.subr.mxu0 0.0
    %1489 = vmatpush1.msra.mxu0 0.0
    %1490 = vmatprep.subr.mxu0 0.0
    %1491 = vmatpush1.msra.mxu0 0.0
    %1492 = vmatprep.subr.mxu0 0.0
    %1493 = vmatpush1.msra.mxu0 0.0
    %1494 = vmatprep.subr.mxu0 0.0
    %1495 = vmatpush1.msra.mxu0 0.0
    %1496 = vmatprep.subr.mxu0 0.0
    %1497 = vmatpush1.msra.mxu0 0.0
    %1498 = vmatprep.subr.mxu0 0.0
    %1499 = vmatpush1.msra.mxu0 0.0
    %1500 = vmatprep.subr.mxu0 0.0
    %1501 = vmatpush1.msra.mxu0 0.0
    %1502 = vmatprep.subr.mxu0 0.0
    %1503 = vmatpush1.msra.mxu0 0.0
    %1504 = vmatprep.subr.mxu0 0.0
    %1505 = vmatpush1.msra.mxu0 0.0
    %1506 = vmatprep.subr.mxu0 0.0
    %1507 = vmatpush1.msra.mxu0 0.0
    %1508 = vmatprep.subr.mxu0 0.0
    %1509 = vmatpush1.msra.mxu0 0.0
    %1510 = vmatprep.subr.mxu0 0.0
    %1511 = vmatpush1.msra.mxu0 0.0
    %1512 = vmatprep.subr.mxu0 0.0
    %1513 = vmatpush1.msra.mxu0 0.0
    %1514 = vmatprep.subr.mxu0 0.0
    %1515 = vmatpush1.msra.mxu0 0.0
    %1516 = vmatprep.subr.mxu0 0.0
    %1517 = vmatpush1.msra.mxu0 0.0
    %1518 = vmatprep.subr.mxu0 0.0
    %1519 = vmatpush1.msra.mxu0 0.0
    %1520 = vmatprep.subr.mxu0 0.0
    %1521 = vmatpush1.msra.mxu0 0.0
    %1522 = vmatprep.subr.mxu0 0.0
    %1523 = vmatpush1.msra.mxu0 0.0
    %1524 = vmatprep.subr.mxu0 0.0
    %1525 = vmatpush1.msra.mxu0 0.0
    %1526 = vmatprep.subr.mxu0 0.0
    %1527 = vmatpush1.msra.mxu0 0.0
    %1528 = vmatprep.subr.mxu0 0.0
    %1529 = vmatpush1.msra.mxu0 0.0
    %1530 = vmatprep.mubr.f32.mxu0 0.0
    %1531 = vmatmul.mubr.f32.gmra.mrb[0].mxu0 %v1464
    %v1532 = vpop.f32.mrb[0].mxu0
    %v1533 = vadd.f32 0.0, %v1532
    %v1534 = vpop.f32.mrb[0].mxu0
    %1535 = vdwg.mxu0
    %v1536 = vadd.f32 %v1039, %v1533
    %v1537 = vtanh.pop %v1536
    %v1538 = vxor.u32 %v1536, 2147483648
    %v1539 = vmul.f32 %v1538, 1.442695
    %v1540 = vpow.pop %v1539
    %v1541 = vadd.f32 %v1540, 1.0
    %v1542 = vrcp.pop %v1541
    %v1543 = vmul.f32 1.0, %v1542
    %v1544 = vsel %vm64, %v1537, %v1543
    %v1545 = vmul.f32 %v1544, %v1454
    %1547 = vrot.lane.b32.xlu0 %v1544, 64
    %v1548 = vpop.permute.xlu0 %1547
    %v1550 = vmul.f32 %v1544, %v1548
    %1552 = vrot.lane.b32.xlu0 %v1550, 32
    %v1553 = vpop.permute.xlu0 %1552
    %v1555 = vadd.f32 %v1545, %v1553
    %v1556 = vtanh.pop %v1555
    %1558 = vrot.lane.b32.xlu0 %v1556, 64
    %v1559 = vpop.permute.xlu0 %1558
    %v1561 = vmul.f32 %v1544, %v1559
    %1563 = vrot.lane.b32.xlu0 %v1561, 32
    %v1564 = vpop.permute.xlu0 %1563
    %v1565 = vsel %vm131, %v1564, 0
    %1567 = vmatprep.subr.mxu0 0.0
    %1568 = vmatpush1.msra.mxu0 %v1058
    %1569 = vmatprep.subr.mxu0 0.0
    %1570 = vmatpush1.msra.mxu0 %v1059
    %1571 = vmatprep.subr.mxu0 0.0
    %1572 = vmatpush1.msra.mxu0 %v1060
    %1573 = vmatprep.subr.mxu0 0.0
    %1574 = vmatpush1.msra.mxu0 %v1061
    %1575 = vmatprep.subr.mxu0 0.0
    %1576 = vmatpush1.msra.mxu0 0.0
    %1577 = vmatprep.subr.mxu0 0.0
    %1578 = vmatpush1.msra.mxu0 0.0
    %1579 = vmatprep.subr.mxu0 0.0
    %1580 = vmatpush1.msra.mxu0 0.0
    %1581 = vmatprep.subr.mxu0 0.0
    %1582 = vmatpush1.msra.mxu0 0.0
    %1583 = vmatprep.subr.mxu0 0.0
    %1584 = vmatpush1.msra.mxu0 0.0
    %1585 = vmatprep.subr.mxu0 0.0
    %1586 = vmatpush1.msra.mxu0 0.0
    %1587 = vmatprep.subr.mxu0 0.0
    %1588 = vmatpush1.msra.mxu0 0.0
    %1589 = vmatprep.subr.mxu0 0.0
    %1590 = vmatpush1.msra.mxu0 0.0
    %1591 = vmatprep.subr.mxu0 0.0
    %1592 = vmatpush1.msra.mxu0 0.0
    %1593 = vmatprep.subr.mxu0 0.0
    %1594 = vmatpush1.msra.mxu0 0.0
    %1595 = vmatprep.subr.mxu0 0.0
    %1596 = vmatpush1.msra.mxu0 0.0
    %1597 = vmatprep.subr.mxu0 0.0
    %1598 = vmatpush1.msra.mxu0 0.0
    %1599 = vmatprep.subr.mxu0 0.0
    %1600 = vmatpush1.msra.mxu0 0.0
    %1601 = vmatprep.subr.mxu0 0.0
    %1602 = vmatpush1.msra.mxu0 0.0
    %1603 = vmatprep.subr.mxu0 0.0
    %1604 = vmatpush1.msra.mxu0 0.0
    %1605 = vmatprep.subr.mxu0 0.0
    %1606 = vmatpush1.msra.mxu0 0.0
    %1607 = vmatprep.subr.mxu0 0.0
    %1608 = vmatpush1.msra.mxu0 0.0
    %1609 = vmatprep.subr.mxu0 0.0
    %1610 = vmatpush1.msra.mxu0 0.0
    %1611 = vmatprep.subr.mxu0 0.0
    %1612 = vmatpush1.msra.mxu0 0.0
    %1613 = vmatprep.subr.mxu0 0.0
    %1614 = vmatpush1.msra.mxu0 0.0
    %1615 = vmatprep.subr.mxu0 0.0
    %1616 = vmatpush1.msra.mxu0 0.0
    %1617 = vmatprep.subr.mxu0 0.0
    %1618 = vmatpush1.msra.mxu0 0.0
    %1619 = vmatprep.subr.mxu0 0.0
    %1620 = vmatpush1.msra.mxu0 0.0
    %1621 = vmatprep.subr.mxu0 0.0
    %1622 = vmatpush1.msra.mxu0 0.0
    %1623 = vmatprep.subr.mxu0 0.0
    %1624 = vmatpush1.msra.mxu0 0.0
    %1625 = vmatprep.subr.mxu0 0.0
    %1626 = vmatpush1.msra.mxu0 0.0
    %1627 = vmatprep.subr.mxu0 0.0
    %1628 = vmatpush1.msra.mxu0 0.0
    %1629 = vmatprep.subr.mxu0 0.0
    %1630 = vmatpush1.msra.mxu0 0.0
    %1631 = vmatprep.mubr.f32.mxu0 0.0
    %1632 = vmatmul.mubr.f32.gmra.mrb[0].mxu0 %v1565
    %v1633 = vpop.f32.mrb[0].mxu0
    %v1634 = vadd.f32 0.0, %v1633
    %v1635 = vpop.f32.mrb[0].mxu0
    %1636 = vdwg.mxu0
    %v1637 = vadd.f32 %v1044, %v1634
    %v1638 = vtanh.pop %v1637
    %v1639 = vxor.u32 %v1637, 2147483648
    %v1640 = vmul.f32 %v1639, 1.442695
    %v1641 = vpow.pop %v1640
    %v1642 = vadd.f32 %v1641, 1.0
    %v1643 = vrcp.pop %v1642
    %v1644 = vmul.f32 1.0, %v1643
    %v1645 = vsel %vm64, %v1638, %v1644
    %v1646 = vmul.f32 %v1645, %v1555
    %1648 = vrot.lane.b32.xlu0 %v1645, 64
    %v1649 = vpop.permute.xlu0 %1648
    %v1651 = vmul.f32 %v1645, %v1649
    %1653 = vrot.lane.b32.xlu0 %v1651, 32
    %v1654 = vpop.permute.xlu0 %1653
    %v1656 = vadd.f32 %v1646, %v1654
    %v1657 = vtanh.pop %v1656
    %1659 = vrot.lane.b32.xlu0 %v1657, 64
    %v1660 = vpop.permute.xlu0 %1659
    %v1662 = vmul.f32 %v1645, %v1660
    %1664 = vrot.lane.b32.xlu0 %v1662, 32
    %v1665 = vpop.permute.xlu0 %1664
    %v1666 = vsel %vm131, %v1665, 0
    %1668 = vmatprep.subr.mxu0 0.0
    %1669 = vmatpush1.msra.mxu0 %v1058
    %1670 = vmatprep.subr.mxu0 0.0
    %1671 = vmatpush1.msra.mxu0 %v1059
    %1672 = vmatprep.subr.mxu0 0.0
    %1673 = vmatpush1.msra.mxu0 %v1060
    %1674 = vmatprep.subr.mxu0 0.0
    %1675 = vmatpush1.msra.mxu0 %v1061
    %1676 = vmatprep.subr.mxu0 0.0
    %1677 = vmatpush1.msra.mxu0 0.0
    %1678 = vmatprep.subr.mxu0 0.0
    %1679 = vmatpush1.msra.mxu0 0.0
    %1680 = vmatprep.subr.mxu0 0.0
    %1681 = vmatpush1.msra.mxu0 0.0
    %1682 = vmatprep.subr.mxu0 0.0
    %1683 = vmatpush1.msra.mxu0 0.0
    %1684 = vmatprep.subr.mxu0 0.0
    %1685 = vmatpush1.msra.mxu0 0.0
    %1686 = vmatprep.subr.mxu0 0.0
    %1687 = vmatpush1.msra.mxu0 0.0
    %1688 = vmatprep.subr.mxu0 0.0
    %1689 = vmatpush1.msra.mxu0 0.0
    %1690 = vmatprep.subr.mxu0 0.0
    %1691 = vmatpush1.msra.mxu0 0.0
    %1692 = vmatprep.subr.mxu0 0.0
    %1693 = vmatpush1.msra.mxu0 0.0
    %1694 = vmatprep.subr.mxu0 0.0
    %1695 = vmatpush1.msra.mxu0 0.0
    %1696 = vmatprep.subr.mxu0 0.0
    %1697 = vmatpush1.msra.mxu0 0.0
    %1698 = vmatprep.subr.mxu0 0.0
    %1699 = vmatpush1.msra.mxu0 0.0
    %1700 = vmatprep.subr.mxu0 0.0
    %1701 = vmatpush1.msra.mxu0 0.0
    %1702 = vmatprep.subr.mxu0 0.0
    %1703 = vmatpush1.msra.mxu0 0.0
    %1704 = vmatprep.subr.mxu0 0.0
    %1705 = vmatpush1.msra.mxu0 0.0
    %1706 = vmatprep.subr.mxu0 0.0
    %1707 = vmatpush1.msra.mxu0 0.0
    %1708 = vmatprep.subr.mxu0 0.0
    %1709 = vmatpush1.msra.mxu0 0.0
    %1710 = vmatprep.subr.mxu0 0.0
    %1711 = vmatpush1.msra.mxu0 0.0
    %1712 = vmatprep.subr.mxu0 0.0
    %1713 = vmatpush1.msra.mxu0 0.0
    %1714 = vmatprep.subr.mxu0 0.0
    %1715 = vmatpush1.msra.mxu0 0.0
    %1716 = vmatprep.subr.mxu0 0.0
    %1717 = vmatpush1.msra.mxu0 0.0
    %1718 = vmatprep.subr.mxu0 0.0
    %1719 = vmatpush1.msra.mxu0 0.0
    %1720 = vmatprep.subr.mxu0 0.0
    %1721 = vmatpush1.msra.mxu0 0.0
    %1722 = vmatprep.subr.mxu0 0.0
    %1723 = vmatpush1.msra.mxu0 0.0
    %1724 = vmatprep.subr.mxu0 0.0
    %1725 = vmatpush1.msra.mxu0 0.0
    %1726 = vmatprep.subr.mxu0 0.0
    %1727 = vmatpush1.msra.mxu0 0.0
    %1728 = vmatprep.subr.mxu0 0.0
    %1729 = vmatpush1.msra.mxu0 0.0
    %1730 = vmatprep.subr.mxu0 0.0
    %1731 = vmatpush1.msra.mxu0 0.0
    %1732 = vmatprep.mubr.f32.mxu0 0.0
    %1733 = vmatmul.mubr.f32.gmra.mrb[0].mxu0 %v1666
    %v1734 = vpop.f32.mrb[0].mxu0
    %v1735 = vadd.f32 0.0, %v1734
    %v1736 = vpop.f32.mrb[0].mxu0
    %1737 = vdwg.mxu0
    %v1738 = vadd.f32 %v1049, %v1735
    %v1739 = vtanh.pop %v1738
    %v1740 = vxor.u32 %v1738, 2147483648
    %v1741 = vmul.f32 %v1740, 1.442695
    %v1742 = vpow.pop %v1741
    %v1743 = vadd.f32 %v1742, 1.0
    %v1744 = vrcp.pop %v1743
    %v1745 = vmul.f32 1.0, %v1744
    %v1746 = vsel %vm64, %v1739, %v1745
    %v1747 = vmul.f32 %v1746, %v1656
    %1749 = vrot.lane.b32.xlu0 %v1746, 64
    %v1750 = vpop.permute.xlu0 %1749
    %v1752 = vmul.f32 %v1746, %v1750
    %1754 = vrot.lane.b32.xlu0 %v1752, 32
    %v1755 = vpop.permute.xlu0 %1754
    %v1757 = vadd.f32 %v1747, %v1755
    %v1758 = vtanh.pop %v1757
    %1760 = vrot.lane.b32.xlu0 %v1758, 64
    %v1761 = vpop.permute.xlu0 %1760
    %v1763 = vmul.f32 %v1746, %v1761
    %1765 = vrot.lane.b32.xlu0 %v1763, 32
    %v1766 = vpop.permute.xlu0 %1765
    %v1767 = vsel %vm131, %v1766, 0
    %1769 = vmatprep.subr.mxu0 0.0
    %1770 = vmatpush1.msra.mxu0 %v1058
    %1771 = vmatprep.subr.mxu0 0.0
    %1772 = vmatpush1.msra.mxu0 %v1059
    %1773 = vmatprep.subr.mxu0 0.0
    %1774 = vmatpush1.msra.mxu0 %v1060
    %1775 = vmatprep.subr.mxu0 0.0
    %1776 = vmatpush1.msra.mxu0 %v1061
    %1777 = vmatprep.subr.mxu0 0.0
    %1778 = vmatpush1.msra.mxu0 0.0
    %1779 = vmatprep.subr.mxu0 0.0
    %1780 = vmatpush1.msra.mxu0 0.0
    %1781 = vmatprep.subr.mxu0 0.0
    %1782 = vmatpush1.msra.mxu0 0.0
    %1783 = vmatprep.subr.mxu0 0.0
    %1784 = vmatpush1.msra.mxu0 0.0
    %1785 = vmatprep.subr.mxu0 0.0
    %1786 = vmatpush1.msra.mxu0 0.0
    %1787 = vmatprep.subr.mxu0 0.0
    %1788 = vmatpush1.msra.mxu0 0.0
    %1789 = vmatprep.subr.mxu0 0.0
    %1790 = vmatpush1.msra.mxu0 0.0
    %1791 = vmatprep.subr.mxu0 0.0
    %1792 = vmatpush1.msra.mxu0 0.0
    %1793 = vmatprep.subr.mxu0 0.0
    %1794 = vmatpush1.msra.mxu0 0.0
    %1795 = vmatprep.subr.mxu0 0.0
    %1796 = vmatpush1.msra.mxu0 0.0
    %1797 = vmatprep.subr.mxu0 0.0
    %1798 = vmatpush1.msra.mxu0 0.0
    %1799 = vmatprep.subr.mxu0 0.0
    %1800 = vmatpush1.msra.mxu0 0.0
    %1801 = vmatprep.subr.mxu0 0.0
    %1802 = vmatpush1.msra.mxu0 0.0
    %1803 = vmatprep.subr.mxu0 0.0
    %1804 = vmatpush1.msra.mxu0 0.0
    %1805 = vmatprep.subr.mxu0 0.0
    %1806 = vmatpush1.msra.mxu0 0.0
    %1807 = vmatprep.subr.mxu0 0.0
    %1808 = vmatpush1.msra.mxu0 0.0
    %1809 = vmatprep.subr.mxu0 0.0
    %1810 = vmatpush1.msra.mxu0 0.0
    %1811 = vmatprep.subr.mxu0 0.0
    %1812 = vmatpush1.msra.mxu0 0.0
    %1813 = vmatprep.subr.mxu0 0.0
    %1814 = vmatpush1.msra.mxu0 0.0
    %1815 = vmatprep.subr.mxu0 0.0
    %1816 = vmatpush1.msra.mxu0 0.0
    %1817 = vmatprep.subr.mxu0 0.0
    %1818 = vmatpush1.msra.mxu0 0.0
    %1819 = vmatprep.subr.mxu0 0.0
    %1820 = vmatpush1.msra.mxu0 0.0
    %1821 = vmatprep.subr.mxu0 0.0
    %1822 = vmatpush1.msra.mxu0 0.0
    %1823 = vmatprep.subr.mxu0 0.0
    %1824 = vmatpush1.msra.mxu0 0.0
    %1825 = vmatprep.subr.mxu0 0.0
    %1826 = vmatpush1.msra.mxu0 0.0
    %1827 = vmatprep.subr.mxu0 0.0
    %1828 = vmatpush1.msra.mxu0 0.0
    %1829 = vmatprep.subr.mxu0 0.0
    %1830 = vmatpush1.msra.mxu0 0.0
    %1831 = vmatprep.subr.mxu0 0.0
    %1832 = vmatpush1.msra.mxu0 0.0
    %1833 = vmatprep.mubr.f32.mxu0 0.0
    %1834 = vmatmul.mubr.f32.gmra.mrb[0].mxu0 %v1767
    %v1835 = vpop.f32.mrb[0].mxu0
    %v1836 = vadd.f32 0.0, %v1835
    %v1837 = vpop.f32.mrb[0].mxu0
    %1838 = vdwg.mxu0
    %v1839 = vadd.f32 %v1054, %v1836
    %v1840 = vtanh.pop %v1839
    %v1841 = vxor.u32 %v1839, 2147483648
    %v1842 = vmul.f32 %v1841, 1.442695
    %v1843 = vpow.pop %v1842
    %v1844 = vadd.f32 %v1843, 1.0
    %v1845 = vrcp.pop %v1844
    %v1846 = vmul.f32 1.0, %v1845
    %v1847 = vsel %vm64, %v1840, %v1846
    %v1848 = vmul.f32 %v1847, %v1757
    %1850 = vrot.lane.b32.xlu0 %v1847, 64
    %v1851 = vpop.permute.xlu0 %1850
    %v1853 = vmul.f32 %v1847, %v1851
    %1855 = vrot.lane.b32.xlu0 %v1853, 32
    %v1856 = vpop.permute.xlu0 %1855
    %v1858 = vadd.f32 %v1848, %v1856
    %v1859 = vtanh.pop %v1858
    %1861 = vrot.lane.b32.xlu0 %v1859, 64
    %v1862 = vpop.permute.xlu0 %1861
    %v1864 = vmul.f32 %v1847, %v1862
    %1866 = vrot.lane.b32.xlu0 %v1864, 32
    %v1867 = vpop.permute.xlu0 %1866
    %1869 = vst.msk [vmem:[#allocation8] sm:$0xff] %vm131, %v1867
    // Predicated region
    $region34: #{tpu_custom_call.1} parent=1 // pred_check
      _
    $region35: #{tpu_custom_call.1} parent=1 // pred_check_branch
      %1871 = sbr.rel (0) target = $region37
    $region36: #{tpu_custom_call.1} parent=1 // pred_region
      %s1873 = ssub.s32 128, 128
      %1874 = vsyncadd [#allocation4], %s1873
      %s1876 = sshll.u32 [#allocation8], 4
      %s1877 = int_to_ptr.vmem [resolvable:$true] %s1876
      %1879 = dma.vmem_to_hbm [thread:$0]  %s1877, 128, %s5, [#allocation4]
    $region37: #{tpu_custom_call.1} parent=1 // pred_fallthru
      _
    // Predicated region
    $region38: #{tpu_custom_call.1} parent=1 // pred_check
      _
    $region39: #{tpu_custom_call.1} parent=1 // pred_check_branch
      %1881 = sbr.rel (0) target = $region41
    $region40: #{tpu_custom_call.1} parent=1 // pred_region
      %1882 = dma.done [#allocation4], 128
    $region41: #{tpu_custom_call.1} parent=1 // pred_fallthru
      _
    %1883 = vsyncpa [#allocation3], 1
    %1884 = vsyncpa [#allocation6], 1
    %1885 = vsyncpa [#allocation4], 1

</llo_original>
